<compile_context>
chip_gen: v7x
topology: tpu7x:2x2x1
jax: 0.10.0
libtpu: 0.0.40
codegen_flags: <defaults>
</compile_context>

<pallas_src>
import functools

import jax
import jax.numpy as jnp
from jax.experimental import pallas as pl
from jax.experimental.pallas import tpu as pltpu

_LANE = 128
# NodeModel eval path: conv1(relu) -> conv2(relu) -> conv_mu -> conv5(relu) -> conv6(relu)
_RELU_FLAGS = (True, True, False, True, True)


def _round_up(v, m):
    return ((v + m - 1) // m) * m


def _full_spec(shape):
    nd = len(shape)
    return pl.BlockSpec(shape, lambda: (0,) * nd)


# ----------------------------------------------------------------------------
# Kernel 1: fused edge-encoder (s/t) + node-model GCN chain.
# Whole arrays resident in VMEM; A_hat is DMA'd once and AX reused everywhere.
# TODO(synk): for N where A_hat (N^2 bf16) no longer fits VMEM, this call needs
#             a (layer, row-block) grid with the N x Cp activations in scratch.
# ----------------------------------------------------------------------------
def _fused_encoder_node_kernel(a_ref, x_ref, wst_ref, bst_ref, wn_ref, bn_ref,
                               s_ref, t_ref, nodes_ref, *, relu_flags):
    a = a_ref[...]                                         # (Np, Np) bf16
    x = x_ref[...]                                         # (Np, Cp) bf16

    # Shared AX = A_hat @ X  (bf16 MXU operands, f32 accumulation).
    ax = jnp.dot(a, x, preferred_element_type=jnp.float32)
    ax_b = ax.astype(jnp.bfloat16)

    # Edge encoder: single matmul against the concatenated [Ws | Wt] weights.
    cp = s_ref.shape[-1]
    st = jnp.dot(ax_b, wst_ref[...], preferred_element_type=jnp.float32)
    st = st + bst_ref[...]                                 # f32 bias epilogue
    s_ref[...] = st[:, :cp].astype(s_ref.dtype)            # split on a 128-lane boundary
    t_ref[...] = st[:, cp:].astype(t_ref.dtype)

    # Node chain; layer 1 reuses AX:  A @ (X W1) == (A X) @ W1.
    h = jnp.dot(ax_b, wn_ref[0], preferred_element_type=jnp.float32) + bn_ref[0]
    if relu_flags[0]:
        h = jnp.maximum(h, 0.0)
    for l in range(1, len(relu_flags)):
        xw = jnp.dot(h.astype(jnp.bfloat16), wn_ref[l],
                     preferred_element_type=jnp.float32)
        h = jnp.dot(a, xw.astype(jnp.bfloat16),
                    preferred_element_type=jnp.float32) + bn_ref[l]
        if relu_flags[l]:
            h = jnp.maximum(h, 0.0)                        # f32 relu epilogue (v5e-safe)
    nodes_ref[...] = h


def fused_encoder_and_nodes(a_p, x_p, wst, bst, wn, bn, relu_flags):
    np_, cp = x_p.shape
    n_layers = wn.shape[0]

    flops = (2 * np_ * np_ * cp                       # AX (shared)
             + 2 * np_ * cp * (2 * cp)                # [s | t]
             + 2 * np_ * cp * cp * n_layers           # H @ W per layer
             + 2 * np_ * np_ * cp * (n_layers - 1))   # A @ (H W), layers 2..L
    bytes_accessed = (a_p.size * 2 + x_p.size * 2 + wst.size * 2 + wn.size * 2
                      + bst.size * 4 + bn.size * 4
                      + 2 * np_ * cp * 2 + np_ * cp * 4)
    vmem_needed = (bytes_accessed
                   + 4 * np_ * cp * 4 + np_ * (2 * cp) * 4)    # f32 temporaries
    vmem_limit = int(min(max(2 * vmem_needed, 16 << 20), 56 << 20))

    kernel = functools.partial(_fused_encoder_node_kernel,
                               relu_flags=tuple(bool(f) for f in relu_flags))
    return pl.pallas_call(
        kernel,
        out_shape=(jax.ShapeDtypeStruct((np_, cp), jnp.bfloat16),   # s
                   jax.ShapeDtypeStruct((np_, cp), jnp.bfloat16),   # t
                   jax.ShapeDtypeStruct((np_, cp), jnp.float32)),   # nodes
        in_specs=[_full_spec(a_p.shape), _full_spec(x_p.shape),
                  _full_spec(wst.shape), _full_spec(bst.shape),
                  _full_spec(wn.shape), _full_spec(bn.shape)],
        out_specs=(_full_spec((np_, cp)), _full_spec((np_, cp)),
                   _full_spec((np_, cp))),
        compiler_params=pltpu.CompilerParams(vmem_limit_bytes=vmem_limit),
        cost_estimate=pl.CostEstimate(flops=int(flops), transcendentals=0,
                                      bytes_accessed=int(bytes_accessed)),
    )(a_p, x_p, wst, bst, wn, bn)


# ----------------------------------------------------------------------------
# Kernel 2: directed inner-product decoder, tiled over the (Np, Np) output.
# ----------------------------------------------------------------------------
def _decoder_kernel(s_ref, t_ref, adj_ref):
    # adj = s @ t.T via dot_general contracting dim 1 of both operands:
    # MXU consumes the transposed operand directly, no XLU transpose / copy.
    adj_ref[...] = jax.lax.dot_general(
        s_ref[...], t_ref[...],
        dimension_numbers=(((1,), (1,)), ((), ())),
        preferred_element_type=jnp.float32)


def decode_adjacency(s_p, t_p):
    np_, cp = s_p.shape
    tile = max(t for t in (512, 256, 128) if np_ % t == 0)
    grid = (np_ // tile, np_ // tile)

    flops = 2 * np_ * np_ * cp
    bytes_accessed = 2 * np_ * cp * 2 + np_ * np_ * 4
    tile_bytes = 2 * (2 * tile * cp * 2 + tile * tile * 4)   # double-buffered tiles
    vmem_limit = int(min(max(2 * tile_bytes + (2 << 20), 16 << 20), 56 << 20))

    return pl.pallas_call(
        _decoder_kernel,
        out_shape=jax.ShapeDtypeStruct((np_, np_), jnp.float32),
        grid_spec=pltpu.PrefetchScalarGridSpec(
            num_scalar_prefetch=0,
            grid=grid,
            in_specs=[pl.BlockSpec((tile, cp), lambda i, j: (i, 0)),
                      pl.BlockSpec((tile, cp), lambda i, j: (j, 0))],
            out_specs=pl.BlockSpec((tile, tile), lambda i, j: (i, j))),
        compiler_params=pltpu.CompilerParams(
            dimension_semantics=("parallel", "parallel"),
            vmem_limit_bytes=vmem_limit),
        cost_estimate=pl.CostEstimate(flops=int(flops), transcendentals=0,
                                      bytes_accessed=int(bytes_accessed)),
    )(s_p, t_p)


# ----------------------------------------------------------------------------
# Glue: GCN-normalized adjacency, padding, parameter init
# ----------------------------------------------------------------------------
def gcn_norm_adj(edge_index, num_nodes):
    # PyG GCNConv default convention: add self-loops, symmetric normalization,
    # A_hat[dst, src] = deg^-1/2[dst] * deg^-1/2[src].
    src, dst = edge_index[0], edge_index[1]
    a = jnp.zeros((num_nodes, num_nodes), jnp.float32).at[dst, src].add(1.0)
    a = a + jnp.eye(num_nodes, dtype=jnp.float32)          # self-loops
    deg = jnp.sum(a, axis=1)                               # in-degree (+1)
    dinv = jax.lax.rsqrt(deg)
    return dinv[:, None] * a * dinv[None, :]


def _pad2(m, rows, cols):
    return jnp.pad(m, ((0, rows - m.shape[0]), (0, cols - m.shape[1])))


def glorot(key, fan_in, fan_out):
    lim = jnp.sqrt(6.0 / (fan_in + fan_out))
    return jax.random.uniform(key, (fan_in, fan_out), jnp.float32, -lim, lim)


def directed_process_vgae_forward(x, edge_index, params):
    n, c = x.shape
    a_hat = gcn_norm_adj(edge_index, n)

    # Pad nodes and channels to 128 so all kernel loads/stores are lane-dense
    # (zero padding does not change the valid [:n, :c] block of any output).
    np_ = _round_up(n, _LANE)
    cp = _round_up(c, _LANE)

    a_p = _pad2(a_hat, np_, np_).astype(jnp.bfloat16)
    x_p = _pad2(x, np_, cp).astype(jnp.bfloat16)
    wst = jnp.concatenate([_pad2(params["ws"], cp, cp),
                           _pad2(params["wt"], cp, cp)], axis=1).astype(jnp.bfloat16)
    bst = jnp.concatenate([_pad2(params["bs"], 1, cp),
                           _pad2(params["bt"], 1, cp)], axis=1)            # f32
    n_layers = params["w_node"].shape[0]
    wn = jnp.stack([_pad2(params["w_node"][l], cp, cp) for l in range(n_layers)],
                   axis=0).astype(jnp.bfloat16)
    bn = jnp.stack([_pad2(params["b_node"][l], 1, cp) for l in range(n_layers)],
                   axis=0)                                                 # f32

    # NodeModel (eval): conv1(relu) -> conv2(relu) -> conv_mu (reparam==mu) -> conv5(relu) -> conv6(relu)
    # TODO(synk): training-mode reparameterization noise (randn * exp(logstd) / 10) not implemented;
    #             the eval path (return mu) is used, so conv_logstd / conv3/4/7/8 are unused as in the reference.
    s_p, t_p, nodes_p = fused_encoder_and_nodes(a_p, x_p, wst, bst, wn, bn,
                                                _RELU_FLAGS)
    adj_p = decode_adjacency(s_p, t_p)
    return adj_p[:n, :n], nodes_p[:n, :c]


# ----------------------------------------------------------------------------
# Reference (plain JAX, f32 math) for sanity checking.  Primary matmul operands
# are quantized to bf16 to match the kernel's MXU inputs; biases stay f32.
# ----------------------------------------------------------------------------
def _ref_forward(x, edge_index, params):
    q = lambda v: v.astype(jnp.bfloat16).astype(jnp.float32)
    a = q(gcn_norm_adj(edge_index, x.shape[0]))
    xq = q(x)
    gcn = lambda h, w, b: a @ (h @ q(w)) + b
    s = gcn(xq, params["ws"], params["bs"])
    t = gcn(xq, params["wt"], params["bt"])
    adj = s @ t.T
    h = xq
    for l, do_relu in enumerate(_RELU_FLAGS):
        h = gcn(h, params["w_node"][l], params["b_node"][l])
        if do_relu:
            h = jnp.maximum(h, 0.0)
    return adj, h


# ----------------------------------------------------------------------------
if __name__ == "__main__":
    N, C, E = 8, 6, 16          # 8 nodes, node_channels=6 (NodeModel(6) default), 16 edges

    key = jax.random.PRNGKey(0)
    k_x, k_ws, k_wt, k_node = jax.random.split(key, 4)

    x = jax.random.normal(k_x, (N, C), jnp.float32)
    # deterministic directed edge list [2, E] (src row 0, dst row 1)
    src = jnp.arange(E, dtype=jnp.int32) % N
    dst = (3 * jnp.arange(E, dtype=jnp.int32) + 1) % N
    edge_index = jnp.stack([src, dst], axis=0)

    # TODO(synk): `edge_encoder` is a required ctor arg with no definition in the reference;
    #             a synthetic single-GCN-layer-per-branch encoder (s-branch, t-branch) is used.
    node_keys = jax.random.split(k_node, 5)
    params = {
        "ws": glorot(k_ws, C, C), "bs": jnp.zeros((1, C), jnp.float32),
        "wt": glorot(k_wt, C, C), "bt": jnp.zeros((1, C), jnp.float32),
        # stacked weights for the 5 GCN layers actually used in NodeModel.forward:
        # conv1, conv2, conv_mu, conv5, conv6
        "w_node": jnp.stack([glorot(k, C, C) for k in node_keys], axis=0),
        "b_node": jnp.zeros((5, 1, C), jnp.float32),
    }

    forward = jax.jit(directed_process_vgae_forward)
    adj_pred, nodes = forward(x, edge_index, params)
    jax.block_until_ready((adj_pred, nodes))

    adj_ref, nodes_ref = _ref_forward(x, edge_index, params)
    assert adj_pred.shape == (N, N) and nodes.shape == (N, C)
    # bf16 MXU operands with f32 accumulation: ~3 significant digits -> loosened tolerance.
    assert jnp.allclose(adj_pred, adj_ref, atol=7.5e-2, rtol=7.5e-2), \
        float(jnp.max(jnp.abs(adj_pred - adj_ref)))
    assert jnp.allclose(nodes, nodes_ref, atol=7.5e-2, rtol=7.5e-2), \
        float(jnp.max(jnp.abs(nodes - nodes_ref)))

    print("KERNEL_OK")
</pallas_src>

<mosaic_0001>
module attributes {stable_mosaic.version = 11 : i64} {
  func.func private @main(%arg0: i32) attributes {dimension_semantics = [#tpu.dimension_semantics<core_parallel>], iteration_bounds = array<i64: 2>, tpu.core_type = #tpu.core_type<sc_scalar_subcore>, window_params = []} {
    return
  }
}

module attributes {stable_mosaic.version = 11 : i64} {
  func.func private @main(%arg0: i32) attributes {dimension_semantics = [#tpu.dimension_semantics<core_parallel>], iteration_bounds = array<i64: 2>, tpu.core_type = #tpu.core_type<sc_scalar_subcore>, window_params = []} {
    return
  }
}

module attributes {stable_mosaic.version = 11 : i64} {
  func.func @_decoder_kernel(%arg0: i32, %arg1: i32, %arg2: memref<128x128xbf16, #tpu.memory_space<vmem>>, %arg3: memref<128x128xbf16, #tpu.memory_space<vmem>>, %arg4: memref<128x128xf32, #tpu.memory_space<vmem>>) attributes {dimension_semantics = [#tpu.dimension_semantics<parallel>, #tpu.dimension_semantics<parallel>], iteration_bounds = array<i64: 1, 1>, scalar_prefetch = 0 : i64, scratch_operands = 0 : i64, tpu.core_type = #tpu.core_type<tc>, window_params = [{transform_indices = @transform_0, window_bounds = array<i64: 128, 128>}, {transform_indices = @transform_1, window_bounds = array<i64: 128, 128>}, {transform_indices = @transform_2, window_bounds = array<i64: 128, 128>}]} {
    %c0 = arith.constant 0 : index
    %c0_0 = arith.constant 0 : index
    %0 = vector.load %arg2[%c0, %c0_0] : memref<128x128xbf16, #tpu.memory_space<vmem>>, vector<128x128xbf16>
    %c0_1 = arith.constant 0 : index
    %c0_2 = arith.constant 0 : index
    %1 = vector.load %arg3[%c0_1, %c0_2] : memref<128x128xbf16, #tpu.memory_space<vmem>>, vector<128x128xbf16>
    %cst = arith.constant dense<0.000000e+00> : vector<128x128xf32>
    %2 = tpu.matmul %0, %1, %cst {dimension_numbers = #tpu.dot_dimension_numbers<[1], [1], [0], [0], [0, 0, 1, 0], [], []>} : vector<128x128xbf16>, vector<128x128xbf16>, vector<128x128xf32> -> vector<128x128xf32>
    %c0_3 = arith.constant 0 : index
    %c0_4 = arith.constant 0 : index
    %3 = vector.load %arg4[%c0_3, %c0_4] : memref<128x128xf32, #tpu.memory_space<vmem>>, vector<128x128xf32>
    tpu.vector_store %arg4[%c0_3, %c0_4], %2 {strides = array<i32>} : memref<128x128xf32, #tpu.memory_space<vmem>>, vector<128x128xf32>,
    return
  }
  func.func @transform_0(%arg0: i32, %arg1: i32) -> (i32, i32) {
    %c0_i32 = arith.constant 0 : i32
    %c0_i32_0 = arith.constant 0 : i32
    return %arg0, %c0_i32 : i32, i32
  }
  func.func @transform_1(%arg0: i32, %arg1: i32) -> (i32, i32) {
    %c0_i32 = arith.constant 0 : i32
    %c0_i32_0 = arith.constant 0 : i32
    return %arg1, %c0_i32 : i32, i32
  }
  func.func @transform_2(%arg0: i32, %arg1: i32) -> (i32, i32) {
    %c0_i32 = arith.constant 0 : i32
    return %arg0, %arg1 : i32, i32
  }
}

module attributes {stable_mosaic.version = 11 : i64} {
  func.func @_fused_encoder_node_kernel(%arg0: memref<128x128xbf16, #tpu.memory_space<vmem>>, %arg1: memref<128x128xbf16, #tpu.memory_space<vmem>>, %arg2: memref<128x256xbf16, #tpu.memory_space<vmem>>, %arg3: memref<1x256xf32, #tpu.memory_space<vmem>>, %arg4: memref<5x128x128xbf16, #tpu.memory_space<vmem>>, %arg5: memref<5x1x128xf32, #tpu.memory_space<vmem>>, %arg6: memref<128x128xbf16, #tpu.memory_space<vmem>>, %arg7: memref<128x128xbf16, #tpu.memory_space<vmem>>, %arg8: memref<128x128xf32, #tpu.memory_space<vmem>>) attributes {dimension_semantics = [], scalar_prefetch = 0 : i64, scratch_operands = 0 : i64, tpu.core_type = #tpu.core_type<tc>} {
    %c0 = arith.constant 0 : index
    %c0_0 = arith.constant 0 : index
    %0 = vector.load %arg0[%c0, %c0_0] : memref<128x128xbf16, #tpu.memory_space<vmem>>, vector<128x128xbf16>
    %c0_1 = arith.constant 0 : index
    %c0_2 = arith.constant 0 : index
    %1 = vector.load %arg1[%c0_1, %c0_2] : memref<128x128xbf16, #tpu.memory_space<vmem>>, vector<128x128xbf16>
    %cst = arith.constant dense<0.000000e+00> : vector<128x128xf32>
    %2 = tpu.matmul %0, %1, %cst {dimension_numbers = #tpu.dot_dimension_numbers<[1], [0], [0], [1], [0, 0, 1, 1], [], []>} : vector<128x128xbf16>, vector<128x128xbf16>, vector<128x128xf32> -> vector<128x128xf32>
    %3 = arith.truncf %2 : vector<128x128xf32> to vector<128x128xbf16>
    %c0_3 = arith.constant 0 : index
    %c0_4 = arith.constant 0 : index
    %4 = vector.load %arg2[%c0_3, %c0_4] : memref<128x256xbf16, #tpu.memory_space<vmem>>, vector<128x256xbf16>
    %cst_5 = arith.constant dense<0.000000e+00> : vector<128x256xf32>
    %5 = tpu.matmul %3, %4, %cst_5 {dimension_numbers = #tpu.dot_dimension_numbers<[1], [0], [0], [1], [0, 0, 1, 1], [], []>} : vector<128x128xbf16>, vector<128x256xbf16>, vector<128x256xf32> -> vector<128x256xf32>
    %c0_6 = arith.constant 0 : index
    %c0_7 = arith.constant 0 : index
    %6 = vector.load %arg3[%c0_6, %c0_7] : memref<1x256xf32, #tpu.memory_space<vmem>>, vector<1x256xf32>
    %7 = vector.broadcast %6 : vector<1x256xf32> to vector<128x256xf32>
    %8 = arith.addf %5, %7 : vector<128x256xf32>
    %9 = vector.extract_strided_slice %8 {offsets = [0, 0], sizes = [128, 128], strides = [1, 1]} : vector<128x256xf32> to vector<128x128xf32>
    %10 = arith.truncf %9 : vector<128x128xf32> to vector<128x128xbf16>
    %c0_8 = arith.constant 0 : index
    %c0_9 = arith.constant 0 : index
    %11 = vector.load %arg6[%c0_8, %c0_9] : memref<128x128xbf16, #tpu.memory_space<vmem>>, vector<128x128xbf16>
    tpu.vector_store %arg6[%c0_8, %c0_9], %10 {strides = array<i32>} : memref<128x128xbf16, #tpu.memory_space<vmem>>, vector<128x128xbf16>,
    %12 = vector.extract_strided_slice %8 {offsets = [0, 128], sizes = [128, 128], strides = [1, 1]} : vector<128x256xf32> to vector<128x128xf32>
    %13 = arith.truncf %12 : vector<128x128xf32> to vector<128x128xbf16>
    %c0_10 = arith.constant 0 : index
    %c0_11 = arith.constant 0 : index
    %14 = vector.load %arg7[%c0_10, %c0_11] : memref<128x128xbf16, #tpu.memory_space<vmem>>, vector<128x128xbf16>
    tpu.vector_store %arg7[%c0_10, %c0_11], %13 {strides = array<i32>} : memref<128x128xbf16, #tpu.memory_space<vmem>>, vector<128x128xbf16>,
    %c0_12 = arith.constant 0 : index
    %c0_13 = arith.constant 0 : index
    %c0_14 = arith.constant 0 : index
    %15 = vector.load %arg4[%c0_12, %c0_13, %c0_14] : memref<5x128x128xbf16, #tpu.memory_space<vmem>>, vector<1x128x128xbf16>
    %16 = vector.shape_cast %15 : vector<1x128x128xbf16> to vector<128x128xbf16>
    %cst_15 = arith.constant dense<0.000000e+00> : vector<128x128xf32>
    %17 = tpu.matmul %3, %16, %cst_15 {dimension_numbers = #tpu.dot_dimension_numbers<[1], [0], [0], [1], [0, 0, 1, 1], [], []>} : vector<128x128xbf16>, vector<128x128xbf16>, vector<128x128xf32> -> vector<128x128xf32>
    %c0_16 = arith.constant 0 : index
    %c0_17 = arith.constant 0 : index
    %c0_18 = arith.constant 0 : index
    %18 = vector.load %arg5[%c0_16, %c0_17, %c0_18] : memref<5x1x128xf32, #tpu.memory_space<vmem>>, vector<1x1x128xf32>
    %19 = vector.shape_cast %18 : vector<1x1x128xf32> to vector<1x128xf32>
    %20 = vector.broadcast %19 : vector<1x128xf32> to vector<128x128xf32>
    %21 = arith.addf %17, %20 : vector<128x128xf32>
    %cst_19 = arith.constant 0.000000e+00 : f32
    %22 = vector.broadcast %cst_19 : f32 to vector<128x128xf32>
    %23 = arith.maximumf %21, %22 : vector<128x128xf32>
    %24 = arith.truncf %23 : vector<128x128xf32> to vector<128x128xbf16>
    %c1 = arith.constant 1 : index
    %c0_20 = arith.constant 0 : index
    %c0_21 = arith.constant 0 : index
    %25 = vector.load %arg4[%c1, %c0_20, %c0_21] : memref<5x128x128xbf16, #tpu.memory_space<vmem>>, vector<1x128x128xbf16>
    %26 = vector.shape_cast %25 : vector<1x128x128xbf16> to vector<128x128xbf16>
    %cst_22 = arith.constant dense<0.000000e+00> : vector<128x128xf32>
    %27 = tpu.matmul %24, %26, %cst_22 {dimension_numbers = #tpu.dot_dimension_numbers<[1], [0], [0], [1], [0, 0, 1, 1], [], []>} : vector<128x128xbf16>, vector<128x128xbf16>, vector<128x128xf32> -> vector<128x128xf32>
    %28 = arith.truncf %27 : vector<128x128xf32> to vector<128x128xbf16>
    %cst_23 = arith.constant dense<0.000000e+00> : vector<128x128xf32>
    %29 = tpu.matmul %0, %28, %cst_23 {dimension_numbers = #tpu.dot_dimension_numbers<[1], [0], [0], [1], [0, 0, 1, 1], [], []>} : vector<128x128xbf16>, vector<128x128xbf16>, vector<128x128xf32> -> vector<128x128xf32>
    %c1_24 = arith.constant 1 : index
    %c0_25 = arith.constant 0 : index
    %c0_26 = arith.constant 0 : index
    %30 = vector.load %arg5[%c1_24, %c0_25, %c0_26] : memref<5x1x128xf32, #tpu.memory_space<vmem>>, vector<1x1x128xf32>
    %31 = vector.shape_cast %30 : vector<1x1x128xf32> to vector<1x128xf32>
    %32 = vector.broadcast %31 : vector<1x128xf32> to vector<128x128xf32>
    %33 = arith.addf %29, %32 : vector<128x128xf32>
    %cst_27 = arith.constant 0.000000e+00 : f32
    %34 = vector.broadcast %cst_27 : f32 to vector<128x128xf32>
    %35 = arith.maximumf %33, %34 : vector<128x128xf32>
    %36 = arith.truncf %35 : vector<128x128xf32> to vector<128x128xbf16>
    %c2 = arith.constant 2 : index
    %c0_28 = arith.constant 0 : index
    %c0_29 = arith.constant 0 : index
    %37 = vector.load %arg4[%c2, %c0_28, %c0_29] : memref<5x128x128xbf16, #tpu.memory_space<vmem>>, vector<1x128x128xbf16>
    %38 = vector.shape_cast %37 : vector<1x128x128xbf16> to vector<128x128xbf16>
    %cst_30 = arith.constant dense<0.000000e+00> : vector<128x128xf32>
    %39 = tpu.matmul %36, %38, %cst_30 {dimension_numbers = #tpu.dot_dimension_numbers<[1], [0], [0], [1], [0, 0, 1, 1], [], []>} : vector<128x128xbf16>, vector<128x128xbf16>, vector<128x128xf32> -> vector<128x128xf32>
    %40 = arith.truncf %39 : vector<128x128xf32> to vector<128x128xbf16>
    %cst_31 = arith.constant dense<0.000000e+00> : vector<128x128xf32>
    %41 = tpu.matmul %0, %40, %cst_31 {dimension_numbers = #tpu.dot_dimension_numbers<[1], [0], [0], [1], [0, 0, 1, 1], [], []>} : vector<128x128xbf16>, vector<128x128xbf16>, vector<128x128xf32> -> vector<128x128xf32>
    %c2_32 = arith.constant 2 : index
    %c0_33 = arith.constant 0 : index
    %c0_34 = arith.constant 0 : index
    %42 = vector.load %arg5[%c2_32, %c0_33, %c0_34] : memref<5x1x128xf32, #tpu.memory_space<vmem>>, vector<1x1x128xf32>
    %43 = vector.shape_cast %42 : vector<1x1x128xf32> to vector<1x128xf32>
    %44 = vector.broadcast %43 : vector<1x128xf32> to vector<128x128xf32>
    %45 = arith.addf %41, %44 : vector<128x128xf32>
    %46 = arith.truncf %45 : vector<128x128xf32> to vector<128x128xbf16>
    %c3 = arith.constant 3 : index
    %c0_35 = arith.constant 0 : index
    %c0_36 = arith.constant 0 : index
    %47 = vector.load %arg4[%c3, %c0_35, %c0_36] : memref<5x128x128xbf16, #tpu.memory_space<vmem>>, vector<1x128x128xbf16>
    %48 = vector.shape_cast %47 : vector<1x128x128xbf16> to vector<128x128xbf16>
    %cst_37 = arith.constant dense<0.000000e+00> : vector<128x128xf32>
    %49 = tpu.matmul %46, %48, %cst_37 {dimension_numbers = #tpu.dot_dimension_numbers<[1], [0], [0], [1], [0, 0, 1, 1], [], []>} : vector<128x128xbf16>, vector<128x128xbf16>, vector<128x128xf32> -> vector<128x128xf32>
    %50 = arith.truncf %49 : vector<128x128xf32> to vector<128x128xbf16>
    %cst_38 = arith.constant dense<0.000000e+00> : vector<128x128xf32>
    %51 = tpu.matmul %0, %50, %cst_38 {dimension_numbers = #tpu.dot_dimension_numbers<[1], [0], [0], [1], [0, 0, 1, 1], [], []>} : vector<128x128xbf16>, vector<128x128xbf16>, vector<128x128xf32> -> vector<128x128xf32>
    %c3_39 = arith.constant 3 : index
    %c0_40 = arith.constant 0 : index
    %c0_41 = arith.constant 0 : index
    %52 = vector.load %arg5[%c3_39, %c0_40, %c0_41] : memref<5x1x128xf32, #tpu.memory_space<vmem>>, vector<1x1x128xf32>
    %53 = vector.shape_cast %52 : vector<1x1x128xf32> to vector<1x128xf32>
    %54 = vector.broadcast %53 : vector<1x128xf32> to vector<128x128xf32>
    %55 = arith.addf %51, %54 : vector<128x128xf32>
    %cst_42 = arith.constant 0.000000e+00 : f32
    %56 = vector.broadcast %cst_42 : f32 to vector<128x128xf32>
    %57 = arith.maximumf %55, %56 : vector<128x128xf32>
    %58 = arith.truncf %57 : vector<128x128xf32> to vector<128x128xbf16>
    %c4 = arith.constant 4 : index
    %c0_43 = arith.constant 0 : index
    %c0_44 = arith.constant 0 : index
    %59 = vector.load %arg4[%c4, %c0_43, %c0_44] : memref<5x128x128xbf16, #tpu.memory_space<vmem>>, vector<1x128x128xbf16>
    %60 = vector.shape_cast %59 : vector<1x128x128xbf16> to vector<128x128xbf16>
    %cst_45 = arith.constant dense<0.000000e+00> : vector<128x128xf32>
    %61 = tpu.matmul %58, %60, %cst_45 {dimension_numbers = #tpu.dot_dimension_numbers<[1], [0], [0], [1], [0, 0, 1, 1], [], []>} : vector<128x128xbf16>, vector<128x128xbf16>, vector<128x128xf32> -> vector<128x128xf32>
    %62 = arith.truncf %61 : vector<128x128xf32> to vector<128x128xbf16>
    %cst_46 = arith.constant dense<0.000000e+00> : vector<128x128xf32>
    %63 = tpu.matmul %0, %62, %cst_46 {dimension_numbers = #tpu.dot_dimension_numbers<[1], [0], [0], [1], [0, 0, 1, 1], [], []>} : vector<128x128xbf16>, vector<128x128xbf16>, vector<128x128xf32> -> vector<128x128xf32>
    %c4_47 = arith.constant 4 : index
    %c0_48 = arith.constant 0 : index
    %c0_49 = arith.constant 0 : index
    %64 = vector.load %arg5[%c4_47, %c0_48, %c0_49] : memref<5x1x128xf32, #tpu.memory_space<vmem>>, vector<1x1x128xf32>
    %65 = vector.shape_cast %64 : vector<1x1x128xf32> to vector<1x128xf32>
    %66 = vector.broadcast %65 : vector<1x128xf32> to vector<128x128xf32>
    %67 = arith.addf %63, %66 : vector<128x128xf32>
    %cst_50 = arith.constant 0.000000e+00 : f32
    %68 = vector.broadcast %cst_50 : f32 to vector<128x128xf32>
    %69 = arith.maximumf %67, %68 : vector<128x128xf32>
    %c0_51 = arith.constant 0 : index
    %c0_52 = arith.constant 0 : index
    %70 = vector.load %arg8[%c0_51, %c0_52] : memref<128x128xf32, #tpu.memory_space<vmem>>, vector<128x128xf32>
    tpu.vector_store %arg8[%c0_51, %c0_52], %69 {strides = array<i32>} : memref<128x128xf32, #tpu.memory_space<vmem>>, vector<128x128xf32>,
    return
  }
}

</mosaic_0001>

<llo_original>
// kernel: directed_process_vgae_forward.3
$region0: #{directed_process_vgae_forward.3}
  #allocation0 [shape = 'u32[]', space=smem, size = 0x4, offset = 0x4, fixed_abs, tag = 'smem constant byte address 0x4 - core index']
  #allocation1 [shape = 'u32[144,128]{1,0:T(1,128)}', space=vmem, size = 0x12000, scoped, tag = 'internal scratch']
  %s0 = inlined_call_operand.vmem [shape: bf16[128,128], index: 0, kind: input, shape index: {}]
  %s1 = inlined_call_operand.vmem [shape: bf16[128,128], index: 1, kind: input, shape index: {}]
  %s2 = inlined_call_operand.vmem [shape: f32[128,128], index: 2, kind: output, shape index: {}]
  %s3 = sld [smem:[#allocation0]]
  $region18: #{directed_process_vgae_forward.3} parent=0
    _
  %s5 = ssub.s32 1, %s3
  %s6 = scalar_select 0, %s5, %s3
  // Predicated region
  $region2: #{directed_process_vgae_forward.3} parent=0 // pred_check
    _
  $region3: #{directed_process_vgae_forward.3} parent=0 // pred_check_branch
    %8 = sbr.rel (0) target = $region5
  $region4: #{directed_process_vgae_forward.3} parent=0 // pred_region
    _
  $region5: #{directed_process_vgae_forward.3} parent=0 // pred_fallthru
    _
  // Predicated region
  $region6: #{directed_process_vgae_forward.3} parent=0 // pred_check
    _
  $region7: #{directed_process_vgae_forward.3} parent=0 // pred_check_branch
    %10 = sbr.rel (0) target = $region9
  $region8: #{directed_process_vgae_forward.3} parent=0 // pred_region
    _
  $region9: #{directed_process_vgae_forward.3} parent=0 // pred_fallthru
    _
  %v12 = vld [vmem:[%s0] sm:$0xf]
  %v13 = vld [vmem:[%s0 + $0x4] sm:$0xf]
  %v14 = vld [vmem:[%s0 + $0x8] sm:$0xf]
  %v15 = vld [vmem:[%s0 + $0xc] sm:$0xf]
  %v16 = vld [vmem:[%s0 + $0x10] sm:$0xf]
  %v17 = vld [vmem:[%s0 + $0x14] sm:$0xf]
  %v18 = vld [vmem:[%s0 + $0x18] sm:$0xf]
  %v19 = vld [vmem:[%s0 + $0x1c] sm:$0xf]
  %v20 = vld [vmem:[%s0 + $0x20] sm:$0xf]
  %v21 = vld [vmem:[%s0 + $0x24] sm:$0xf]
  %v22 = vld [vmem:[%s0 + $0x28] sm:$0xf]
  %v23 = vld [vmem:[%s0 + $0x2c] sm:$0xf]
  %v24 = vld [vmem:[%s0 + $0x30] sm:$0xf]
  %v25 = vld [vmem:[%s0 + $0x34] sm:$0xf]
  %v26 = vld [vmem:[%s0 + $0x38] sm:$0xf]
  %v27 = vld [vmem:[%s0 + $0x3c] sm:$0xf]
  %v28 = vld [vmem:[%s1] sm:$0xf]
  %v29 = vld [vmem:[%s1 + $0x4] sm:$0xf]
  %v30 = vld [vmem:[%s1 + $0x8] sm:$0xf]
  %v31 = vld [vmem:[%s1 + $0xc] sm:$0xf]
  %v32 = vld [vmem:[%s1 + $0x10] sm:$0xf]
  %v33 = vld [vmem:[%s1 + $0x14] sm:$0xf]
  %v34 = vld [vmem:[%s1 + $0x18] sm:$0xf]
  %v35 = vld [vmem:[%s1 + $0x1c] sm:$0xf]
  %v36 = vld [vmem:[%s1 + $0x20] sm:$0xf]
  %v37 = vld [vmem:[%s1 + $0x24] sm:$0xf]
  %v38 = vld [vmem:[%s1 + $0x28] sm:$0xf]
  %v39 = vld [vmem:[%s1 + $0x2c] sm:$0xf]
  %v40 = vld [vmem:[%s1 + $0x30] sm:$0xf]
  %v41 = vld [vmem:[%s1 + $0x34] sm:$0xf]
  %v42 = vld [vmem:[%s1 + $0x38] sm:$0xf]
  %v43 = vld [vmem:[%s1 + $0x3c] sm:$0xf]
  %v60 = vunpack.c.l.b16 %v12
  %v61 = vunpack.c.l.b16 %v13
  %v62 = vunpack.c.l.b16 %v14
  %v63 = vunpack.c.l.b16 %v15
  %v64 = vunpack.c.l.b16 %v16
  %v65 = vunpack.c.l.b16 %v17
  %v66 = vunpack.c.l.b16 %v18
  %v67 = vunpack.c.l.b16 %v19
  %v68 = vunpack.c.l.b16 %v20
  %v69 = vunpack.c.l.b16 %v21
  %v70 = vunpack.c.l.b16 %v22
  %v71 = vunpack.c.l.b16 %v23
  %v72 = vunpack.c.l.b16 %v24
  %v73 = vunpack.c.l.b16 %v25
  %v74 = vunpack.c.l.b16 %v26
  %v75 = vunpack.c.l.b16 %v27
  %v76 = vpack.c.b16 %v61, %v60
  %v77 = vpack.c.b16 %v63, %v62
  %v78 = vpack.c.b16 %v65, %v64
  %v79 = vpack.c.b16 %v67, %v66
  %v80 = vpack.c.b16 %v69, %v68
  %v81 = vpack.c.b16 %v71, %v70
  %v82 = vpack.c.b16 %v73, %v72
  %v83 = vpack.c.b16 %v75, %v74
  %v108 = vunpack.c.l.b16 %v28
  %v109 = vunpack.c.l.b16 %v29
  %v110 = vunpack.c.l.b16 %v30
  %v111 = vunpack.c.l.b16 %v31
  %v112 = vunpack.c.l.b16 %v32
  %v113 = vunpack.c.l.b16 %v33
  %v114 = vunpack.c.l.b16 %v34
  %v115 = vunpack.c.l.b16 %v35
  %v116 = vunpack.c.l.b16 %v36
  %v117 = vunpack.c.l.b16 %v37
  %v118 = vunpack.c.l.b16 %v38
  %v119 = vunpack.c.l.b16 %v39
  %v120 = vunpack.c.l.b16 %v40
  %v121 = vunpack.c.l.b16 %v41
  %v122 = vunpack.c.l.b16 %v42
  %v123 = vunpack.c.l.b16 %v43
  %v124 = vpack.c.b16 %v109, %v108
  %v125 = vpack.c.b16 %v111, %v110
  %v126 = vpack.c.b16 %v113, %v112
  %v127 = vpack.c.b16 %v115, %v114
  %v128 = vpack.c.b16 %v117, %v116
  %v129 = vpack.c.b16 %v119, %v118
  %v130 = vpack.c.b16 %v121, %v120
  %v131 = vpack.c.b16 %v123, %v122
  %140 = vmatprep.subr.bf16.mxu0 0
  %141 = vmatpush1.bf16.xpose.msra.mxu0 %v124
  %142 = vmatprep.subr.bf16.mxu0 0
  %143 = vmatpush1.bf16.xpose.msra.mxu0 %v125
  %144 = vmatprep.subr.bf16.mxu0 0
  %145 = vmatpush1.bf16.xpose.msra.mxu0 %v126
  %146 = vmatprep.subr.bf16.mxu0 0
  %147 = vmatpush1.bf16.xpose.msra.mxu0 %v127
  %148 = vmatprep.subr.bf16.mxu0 0
  %149 = vmatpush1.bf16.xpose.msra.mxu0 %v128
  %150 = vmatprep.subr.bf16.mxu0 0
  %151 = vmatpush1.bf16.xpose.msra.mxu0 %v129
  %152 = vmatprep.subr.bf16.mxu0 0
  %153 = vmatpush1.bf16.xpose.msra.mxu0 %v130
  %154 = vmatprep.subr.bf16.mxu0 0
  %155 = vmatpush1.bf16.xpose.msra.mxu0 %v131
  %156 = vmatprep.subr.bf16.mxu0 0
  %157 = vmatpush1.bf16.xpose.msra.mxu0 0
  %158 = vmatprep.subr.bf16.mxu0 0
  %159 = vmatpush1.bf16.xpose.msra.mxu0 0
  %160 = vmatprep.subr.bf16.mxu0 0
  %161 = vmatpush1.bf16.xpose.msra.mxu0 0
  %162 = vmatprep.subr.bf16.mxu0 0
  %163 = vmatpush1.bf16.xpose.msra.mxu0 0
  %164 = vmatprep.subr.bf16.mxu0 0
  %165 = vmatpush1.bf16.xpose.msra.mxu0 0
  %166 = vmatprep.subr.bf16.mxu0 0
  %167 = vmatpush1.bf16.xpose.msra.mxu0 0
  %168 = vmatprep.subr.bf16.mxu0 0
  %169 = vmatpush1.bf16.xpose.msra.mxu0 0
  %170 = vmatprep.subr.bf16.mxu0 0
  %171 = vmatpush1.bf16.xpose.msra.mxu0 0
  %172 = vmatprep.mubr.bf16.mxu0 0
  %173 = vmatmul.mubr.bf16.gmra.mrb[0].mxu0 %v76
  %v174 = vpop.f32.mrb[0].mxu0
  %v175 = vadd.f32 0.0, %v174
  %v176 = vpop.f32.mrb[0].mxu0
  %v177 = vpop.f32.mrb[0].mxu0
  %v178 = vadd.f32 0.0, %v177
  %v179 = vpop.f32.mrb[0].mxu0
  %180 = vmatprep.mubr.bf16.mxu0 0
  %181 = vmatmul.mubr.bf16.gmra.mrb[0].mxu0 %v77
  %v182 = vpop.f32.mrb[0].mxu0
  %v183 = vadd.f32 0.0, %v182
  %v184 = vpop.f32.mrb[0].mxu0
  %v185 = vpop.f32.mrb[0].mxu0
  %v186 = vadd.f32 0.0, %v185
  %v187 = vpop.f32.mrb[0].mxu0
  %188 = vmatprep.mubr.bf16.mxu0 0
  %189 = vmatmul.mubr.bf16.gmra.mrb[0].mxu0 %v78
  %v190 = vpop.f32.mrb[0].mxu0
  %v191 = vadd.f32 0.0, %v190
  %v192 = vpop.f32.mrb[0].mxu0
  %v193 = vpop.f32.mrb[0].mxu0
  %v194 = vadd.f32 0.0, %v193
  %v195 = vpop.f32.mrb[0].mxu0
  %196 = vmatprep.mubr.bf16.mxu0 0
  %197 = vmatmul.mubr.bf16.gmra.mrb[0].mxu0 %v79
  %v198 = vpop.f32.mrb[0].mxu0
  %v199 = vadd.f32 0.0, %v198
  %v200 = vpop.f32.mrb[0].mxu0
  %v201 = vpop.f32.mrb[0].mxu0
  %v202 = vadd.f32 0.0, %v201
  %v203 = vpop.f32.mrb[0].mxu0
  %204 = vmatprep.mubr.bf16.mxu0 0
  %205 = vmatmul.mubr.bf16.gmra.mrb[0].mxu0 %v80
  %v206 = vpop.f32.mrb[0].mxu0
  %v207 = vadd.f32 0.0, %v206
  %v208 = vpop.f32.mrb[0].mxu0
  %v209 = vpop.f32.mrb[0].mxu0
  %v210 = vadd.f32 0.0, %v209
  %v211 = vpop.f32.mrb[0].mxu0
  %212 = vmatprep.mubr.bf16.mxu0 0
  %213 = vmatmul.mubr.bf16.gmra.mrb[0].mxu0 %v81
  %v214 = vpop.f32.mrb[0].mxu0
  %v215 = vadd.f32 0.0, %v214
  %v216 = vpop.f32.mrb[0].mxu0
  %v217 = vpop.f32.mrb[0].mxu0
  %v218 = vadd.f32 0.0, %v217
  %v219 = vpop.f32.mrb[0].mxu0
  %220 = vmatprep.mubr.bf16.mxu0 0
  %221 = vmatmul.mubr.bf16.gmra.mrb[0].mxu0 %v82
  %v222 = vpop.f32.mrb[0].mxu0
  %v223 = vadd.f32 0.0, %v222
  %v224 = vpop.f32.mrb[0].mxu0
  %v225 = vpop.f32.mrb[0].mxu0
  %v226 = vadd.f32 0.0, %v225
  %v227 = vpop.f32.mrb[0].mxu0
  %228 = vmatprep.mubr.bf16.mxu0 0
  %229 = vmatmul.mubr.bf16.gmra.mrb[0].mxu0 %v83
  %v230 = vpop.f32.mrb[0].mxu0
  %v231 = vadd.f32 0.0, %v230
  %v232 = vpop.f32.mrb[0].mxu0
  %v233 = vpop.f32.mrb[0].mxu0
  %v234 = vadd.f32 0.0, %v233
  %v235 = vpop.f32.mrb[0].mxu0
  %236 = vdwg.mxu0
  %237 = vst [vmem:[%s2] sm:$0xff] %v175
  %238 = vst [vmem:[%s2 + $0x8] sm:$0xff] %v178
  %239 = vst [vmem:[%s2 + $0x10] sm:$0xff] %v183
  %240 = vst [vmem:[%s2 + $0x18] sm:$0xff] %v186
  %241 = vst [vmem:[%s2 + $0x20] sm:$0xff] %v191
  %242 = vst [vmem:[%s2 + $0x28] sm:$0xff] %v194
  %243 = vst [vmem:[%s2 + $0x30] sm:$0xff] %v199
  %244 = vst [vmem:[%s2 + $0x38] sm:$0xff] %v202
  %245 = vst [vmem:[%s2 + $0x40] sm:$0xff] %v207
  %246 = vst [vmem:[%s2 + $0x48] sm:$0xff] %v210
  %247 = vst [vmem:[%s2 + $0x50] sm:$0xff] %v215
  %248 = vst [vmem:[%s2 + $0x58] sm:$0xff] %v218
  %249 = vst [vmem:[%s2 + $0x60] sm:$0xff] %v223
  %250 = vst [vmem:[%s2 + $0x68] sm:$0xff] %v226
  %251 = vst [vmem:[%s2 + $0x70] sm:$0xff] %v231
  %252 = vst [vmem:[%s2 + $0x78] sm:$0xff] %v234
  // Predicated region
  $region10: #{directed_process_vgae_forward.3} parent=0 // pred_check
    _
  $region11: #{directed_process_vgae_forward.3} parent=0 // pred_check_branch
    %254 = sbr.rel (0) target = $region13
  $region12: #{directed_process_vgae_forward.3} parent=0 // pred_region
    _
  $region13: #{directed_process_vgae_forward.3} parent=0 // pred_fallthru
    _
  // Predicated region
  $region14: #{directed_process_vgae_forward.3} parent=0 // pred_check
    _
  $region15: #{directed_process_vgae_forward.3} parent=0 // pred_check_branch
    %256 = sbr.rel (0) target = $region17
  $region16: #{directed_process_vgae_forward.3} parent=0 // pred_region
    _
  $region17: #{directed_process_vgae_forward.3} parent=0 // pred_fallthru
    _

// kernel: directed_process_vgae_forward.2
$region0: #{directed_process_vgae_forward.2}
  #allocation0 [shape = 'u32[]', space=smem, size = 0x4, offset = 0x4, fixed_abs, tag = 'smem constant byte address 0x4 - core index']
  #allocation1 [shape = 'u32[144,128]{1,0:T(1,128)}', space=vmem, size = 0x12000, scoped, tag = 'internal scratch']
  %s0 = inlined_call_operand.vmem [shape: bf16[128,128], index: 0, kind: input, shape index: {}]
  %s1 = inlined_call_operand.vmem [shape: bf16[128,128], index: 1, kind: input, shape index: {}]
  %s2 = inlined_call_operand.vmem [shape: bf16[128,256], index: 2, kind: input, shape index: {}]
  %s3 = inlined_call_operand.vmem [shape: f32[1,256], index: 3, kind: input, shape index: {}]
  %s4 = inlined_call_operand.vmem [shape: bf16[5,128,128], index: 4, kind: input, shape index: {}]
  %s5 = inlined_call_operand.vmem [shape: f32[5,1,128], index: 5, kind: input, shape index: {}]
  %s6 = inlined_call_operand.vmem [shape: bf16[128,128], index: 6, kind: output, shape index: {0}]
  %s7 = inlined_call_operand.vmem [shape: bf16[128,128], index: 7, kind: output, shape index: {1}]
  %s8 = inlined_call_operand.vmem [shape: f32[128,128], index: 8, kind: output, shape index: {2}]
  %9 = xla_tuple %s6, %s7, %s8
  %s10 = sld [smem:[#allocation0]]
  $region50: #{directed_process_vgae_forward.2} parent=0
    _
  %s12 = ssub.s32 1, %s10
  %s13 = scalar_select 0, %s12, %s10
  // Predicated region
  $region2: #{directed_process_vgae_forward.2} parent=0 // pred_check
    _
  $region3: #{directed_process_vgae_forward.2} parent=0 // pred_check_branch
    %15 = sbr.rel (0) target = $region5
  $region4: #{directed_process_vgae_forward.2} parent=0 // pred_region
    _
  $region5: #{directed_process_vgae_forward.2} parent=0 // pred_fallthru
    _
  // Predicated region
  $region6: #{directed_process_vgae_forward.2} parent=0 // pred_check
    _
  $region7: #{directed_process_vgae_forward.2} parent=0 // pred_check_branch
    %17 = sbr.rel (0) target = $region9
  $region8: #{directed_process_vgae_forward.2} parent=0 // pred_region
    _
  $region9: #{directed_process_vgae_forward.2} parent=0 // pred_fallthru
    _
  // Predicated region
  $region10: #{directed_process_vgae_forward.2} parent=0 // pred_check
    _
  $region11: #{directed_process_vgae_forward.2} parent=0 // pred_check_branch
    %19 = sbr.rel (0) target = $region13
  $region12: #{directed_process_vgae_forward.2} parent=0 // pred_region
    _
  $region13: #{directed_process_vgae_forward.2} parent=0 // pred_fallthru
    _
  // Predicated region
  $region14: #{directed_process_vgae_forward.2} parent=0 // pred_check
    _
  $region15: #{directed_process_vgae_forward.2} parent=0 // pred_check_branch
    %21 = sbr.rel (0) target = $region17
  $region16: #{directed_process_vgae_forward.2} parent=0 // pred_region
    _
  $region17: #{directed_process_vgae_forward.2} parent=0 // pred_fallthru
    _
  // Predicated region
  $region18: #{directed_process_vgae_forward.2} parent=0 // pred_check
    _
  $region19: #{directed_process_vgae_forward.2} parent=0 // pred_check_branch
    %23 = sbr.rel (0) target = $region21
  $region20: #{directed_process_vgae_forward.2} parent=0 // pred_region
    _
  $region21: #{directed_process_vgae_forward.2} parent=0 // pred_fallthru
    _
  // Predicated region
  $region22: #{directed_process_vgae_forward.2} parent=0 // pred_check
    _
  $region23: #{directed_process_vgae_forward.2} parent=0 // pred_check_branch
    %25 = sbr.rel (0) target = $region25
  $region24: #{directed_process_vgae_forward.2} parent=0 // pred_region
    _
  $region25: #{directed_process_vgae_forward.2} parent=0 // pred_fallthru
    _
  %v27 = vld [vmem:[%s0] sm:$0xf]
  %v28 = vld [vmem:[%s0 + $0x4] sm:$0xf]
  %v29 = vld [vmem:[%s0 + $0x8] sm:$0xf]
  %v30 = vld [vmem:[%s0 + $0xc] sm:$0xf]
  %v31 = vld [vmem:[%s0 + $0x10] sm:$0xf]
  %v32 = vld [vmem:[%s0 + $0x14] sm:$0xf]
  %v33 = vld [vmem:[%s0 + $0x18] sm:$0xf]
  %v34 = vld [vmem:[%s0 + $0x1c] sm:$0xf]
  %v35 = vld [vmem:[%s0 + $0x20] sm:$0xf]
  %v36 = vld [vmem:[%s0 + $0x24] sm:$0xf]
  %v37 = vld [vmem:[%s0 + $0x28] sm:$0xf]
  %v38 = vld [vmem:[%s0 + $0x2c] sm:$0xf]
  %v39 = vld [vmem:[%s0 + $0x30] sm:$0xf]
  %v40 = vld [vmem:[%s0 + $0x34] sm:$0xf]
  %v41 = vld [vmem:[%s0 + $0x38] sm:$0xf]
  %v42 = vld [vmem:[%s0 + $0x3c] sm:$0xf]
  %v43 = vld [vmem:[%s1] sm:$0xf]
  %v44 = vld [vmem:[%s1 + $0x4] sm:$0xf]
  %v45 = vld [vmem:[%s1 + $0x8] sm:$0xf]
  %v46 = vld [vmem:[%s1 + $0xc] sm:$0xf]
  %v47 = vld [vmem:[%s1 + $0x10] sm:$0xf]
  %v48 = vld [vmem:[%s1 + $0x14] sm:$0xf]
  %v49 = vld [vmem:[%s1 + $0x18] sm:$0xf]
  %v50 = vld [vmem:[%s1 + $0x1c] sm:$0xf]
  %v51 = vld [vmem:[%s1 + $0x20] sm:$0xf]
  %v52 = vld [vmem:[%s1 + $0x24] sm:$0xf]
  %v53 = vld [vmem:[%s1 + $0x28] sm:$0xf]
  %v54 = vld [vmem:[%s1 + $0x2c] sm:$0xf]
  %v55 = vld [vmem:[%s1 + $0x30] sm:$0xf]
  %v56 = vld [vmem:[%s1 + $0x34] sm:$0xf]
  %v57 = vld [vmem:[%s1 + $0x38] sm:$0xf]
  %v58 = vld [vmem:[%s1 + $0x3c] sm:$0xf]
  %v75 = vunpack.c.l.b16 %v27
  %v76 = vunpack.c.l.b16 %v28
  %v77 = vunpack.c.l.b16 %v29
  %v78 = vunpack.c.l.b16 %v30
  %v79 = vunpack.c.l.b16 %v31
  %v80 = vunpack.c.l.b16 %v32
  %v81 = vunpack.c.l.b16 %v33
  %v82 = vunpack.c.l.b16 %v34
  %v83 = vunpack.c.l.b16 %v35
  %v84 = vunpack.c.l.b16 %v36
  %v85 = vunpack.c.l.b16 %v37
  %v86 = vunpack.c.l.b16 %v38
  %v87 = vunpack.c.l.b16 %v39
  %v88 = vunpack.c.l.b16 %v40
  %v89 = vunpack.c.l.b16 %v41
  %v90 = vunpack.c.l.b16 %v42
  %v91 = vpack.c.b16 %v76, %v75
  %v92 = vpack.c.b16 %v78, %v77
  %v93 = vpack.c.b16 %v80, %v79
  %v94 = vpack.c.b16 %v82, %v81
  %v95 = vpack.c.b16 %v84, %v83
  %v96 = vpack.c.b16 %v86, %v85
  %v97 = vpack.c.b16 %v88, %v87
  %v98 = vpack.c.b16 %v90, %v89
  %v123 = vunpack.c.l.b16 %v43
  %v124 = vunpack.c.l.b16 %v44
  %v125 = vunpack.c.l.b16 %v45
  %v126 = vunpack.c.l.b16 %v46
  %v127 = vunpack.c.l.b16 %v47
  %v128 = vunpack.c.l.b16 %v48
  %v129 = vunpack.c.l.b16 %v49
  %v130 = vunpack.c.l.b16 %v50
  %v131 = vunpack.c.l.b16 %v51
  %v132 = vunpack.c.l.b16 %v52
  %v133 = vunpack.c.l.b16 %v53
  %v134 = vunpack.c.l.b16 %v54
  %v135 = vunpack.c.l.b16 %v55
  %v136 = vunpack.c.l.b16 %v56
  %v137 = vunpack.c.l.b16 %v57
  %v138 = vunpack.c.l.b16 %v58
  %v139 = vpack.c.b16 %v124, %v123
  %v140 = vpack.c.b16 %v126, %v125
  %v141 = vpack.c.b16 %v128, %v127
  %v142 = vpack.c.b16 %v130, %v129
  %v143 = vpack.c.b16 %v132, %v131
  %v144 = vpack.c.b16 %v134, %v133
  %v145 = vpack.c.b16 %v136, %v135
  %v146 = vpack.c.b16 %v138, %v137
  %155 = vmatprep.subr.bf16.mxu0 0
  %156 = vmatpush1.bf16.msra.mxu0 %v139
  %157 = vmatprep.subr.bf16.mxu0 0
  %158 = vmatpush1.bf16.msra.mxu0 %v140
  %159 = vmatprep.subr.bf16.mxu0 0
  %160 = vmatpush1.bf16.msra.mxu0 %v141
  %161 = vmatprep.subr.bf16.mxu0 0
  %162 = vmatpush1.bf16.msra.mxu0 %v142
  %163 = vmatprep.subr.bf16.mxu0 0
  %164 = vmatpush1.bf16.msra.mxu0 %v143
  %165 = vmatprep.subr.bf16.mxu0 0
  %166 = vmatpush1.bf16.msra.mxu0 %v144
  %167 = vmatprep.subr.bf16.mxu0 0
  %168 = vmatpush1.bf16.msra.mxu0 %v145
  %169 = vmatprep.subr.bf16.mxu0 0
  %170 = vmatpush1.bf16.msra.mxu0 %v146
  %171 = vmatprep.subr.bf16.mxu0 0
  %172 = vmatpush1.bf16.msra.mxu0 0
  %173 = vmatprep.subr.bf16.mxu0 0
  %174 = vmatpush1.bf16.msra.mxu0 0
  %175 = vmatprep.subr.bf16.mxu0 0
  %176 = vmatpush1.bf16.msra.mxu0 0
  %177 = vmatprep.subr.bf16.mxu0 0
  %178 = vmatpush1.bf16.msra.mxu0 0
  %179 = vmatprep.subr.bf16.mxu0 0
  %180 = vmatpush1.bf16.msra.mxu0 0
  %181 = vmatprep.subr.bf16.mxu0 0
  %182 = vmatpush1.bf16.msra.mxu0 0
  %183 = vmatprep.subr.bf16.mxu0 0
  %184 = vmatpush1.bf16.msra.mxu0 0
  %185 = vmatprep.subr.bf16.mxu0 0
  %186 = vmatpush1.bf16.msra.mxu0 0
  %187 = vmatprep.mubr.bf16.mxu0 0
  %188 = vmatmul.mubr.bf16.gmra.mrb[0].mxu0 %v91
  %v189 = vpop.f32.mrb[0].mxu0
  %v190 = vadd.f32 0.0, %v189
  %v191 = vpop.f32.mrb[0].mxu0
  %v192 = vpop.f32.mrb[0].mxu0
  %v193 = vadd.f32 0.0, %v192
  %v194 = vpop.f32.mrb[0].mxu0
  %195 = vmatprep.mubr.bf16.mxu0 0
  %196 = vmatmul.mubr.bf16.gmra.mrb[0].mxu0 %v92
  %v197 = vpop.f32.mrb[0].mxu0
  %v198 = vadd.f32 0.0, %v197
  %v199 = vpop.f32.mrb[0].mxu0
  %v200 = vpop.f32.mrb[0].mxu0
  %v201 = vadd.f32 0.0, %v200
  %v202 = vpop.f32.mrb[0].mxu0
  %203 = vmatprep.mubr.bf16.mxu0 0
  %204 = vmatmul.mubr.bf16.gmra.mrb[0].mxu0 %v93
  %v205 = vpop.f32.mrb[0].mxu0
  %v206 = vadd.f32 0.0, %v205
  %v207 = vpop.f32.mrb[0].mxu0
  %v208 = vpop.f32.mrb[0].mxu0
  %v209 = vadd.f32 0.0, %v208
  %v210 = vpop.f32.mrb[0].mxu0
  %211 = vmatprep.mubr.bf16.mxu0 0
  %212 = vmatmul.mubr.bf16.gmra.mrb[0].mxu0 %v94
  %v213 = vpop.f32.mrb[0].mxu0
  %v214 = vadd.f32 0.0, %v213
  %v215 = vpop.f32.mrb[0].mxu0
  %v216 = vpop.f32.mrb[0].mxu0
  %v217 = vadd.f32 0.0, %v216
  %v218 = vpop.f32.mrb[0].mxu0
  %219 = vmatprep.mubr.bf16.mxu0 0
  %220 = vmatmul.mubr.bf16.gmra.mrb[0].mxu0 %v95
  %v221 = vpop.f32.mrb[0].mxu0
  %v222 = vadd.f32 0.0, %v221
  %v223 = vpop.f32.mrb[0].mxu0
  %v224 = vpop.f32.mrb[0].mxu0
  %v225 = vadd.f32 0.0, %v224
  %v226 = vpop.f32.mrb[0].mxu0
  %227 = vmatprep.mubr.bf16.mxu0 0
  %228 = vmatmul.mubr.bf16.gmra.mrb[0].mxu0 %v96
  %v229 = vpop.f32.mrb[0].mxu0
  %v230 = vadd.f32 0.0, %v229
  %v231 = vpop.f32.mrb[0].mxu0
  %v232 = vpop.f32.mrb[0].mxu0
  %v233 = vadd.f32 0.0, %v232
  %v234 = vpop.f32.mrb[0].mxu0
  %235 = vmatprep.mubr.bf16.mxu0 0
  %236 = vmatmul.mubr.bf16.gmra.mrb[0].mxu0 %v97
  %v237 = vpop.f32.mrb[0].mxu0
  %v238 = vadd.f32 0.0, %v237
  %v239 = vpop.f32.mrb[0].mxu0
  %v240 = vpop.f32.mrb[0].mxu0
  %v241 = vadd.f32 0.0, %v240
  %v242 = vpop.f32.mrb[0].mxu0
  %243 = vmatprep.mubr.bf16.mxu0 0
  %244 = vmatmul.mubr.bf16.gmra.mrb[0].mxu0 %v98
  %v245 = vpop.f32.mrb[0].mxu0
  %v246 = vadd.f32 0.0, %v245
  %v247 = vpop.f32.mrb[0].mxu0
  %v248 = vpop.f32.mrb[0].mxu0
  %v249 = vadd.f32 0.0, %v248
  %v250 = vpop.f32.mrb[0].mxu0
  %251 = vdwg.mxu0
  %v252 = vpack.c.bf16 %v193, %v190
  %v253 = vpack.c.bf16 %v201, %v198
  %v254 = vpack.c.bf16 %v209, %v206
  %v255 = vpack.c.bf16 %v217, %v214
  %v256 = vpack.c.bf16 %v225, %v222
  %v257 = vpack.c.bf16 %v233, %v230
  %v258 = vpack.c.bf16 %v241, %v238
  %v259 = vpack.c.bf16 %v249, %v246
  %v260 = vld [vmem:[%s2] sm:$0xff]
  %v261 = vld [vmem:[%s2 + $0x8] sm:$0xff]
  %v262 = vld [vmem:[%s2 + $0x10] sm:$0xff]
  %v263 = vld [vmem:[%s2 + $0x18] sm:$0xff]
  %v264 = vld [vmem:[%s2 + $0x20] sm:$0xff]
  %v265 = vld [vmem:[%s2 + $0x28] sm:$0xff]
  %v266 = vld [vmem:[%s2 + $0x30] sm:$0xff]
  %v267 = vld [vmem:[%s2 + $0x38] sm:$0xff]
  %v268 = vld [vmem:[%s2 + $0x40] sm:$0xff]
  %v269 = vld [vmem:[%s2 + $0x48] sm:$0xff]
  %v270 = vld [vmem:[%s2 + $0x50] sm:$0xff]
  %v271 = vld [vmem:[%s2 + $0x58] sm:$0xff]
  %v272 = vld [vmem:[%s2 + $0x60] sm:$0xff]
  %v273 = vld [vmem:[%s2 + $0x68] sm:$0xff]
  %v274 = vld [vmem:[%s2 + $0x70] sm:$0xff]
  %v275 = vld [vmem:[%s2 + $0x78] sm:$0xff]
  %v276 = vld [vmem:[%s3] sm:$0x3]
  %v278 = vlaneseq
  %v279 = vshrl.u32 %v278, 7
  %v280 = vsub.s32 0, %v279
  %v281 = vrot.slane %v276, %v280
  %v282 = vlaneseq
  %v283 = vshrl.u32 %v282, 7
  %v284 = vsub.s32 1, %v283
  %v285 = vrot.slane %v276, %v284
  %v304 = vunpack.c.l.b16 %v260
  %v305 = vunpack.c.h.b16 %v260
  %v306 = vunpack.c.l.b16 %v261
  %v307 = vunpack.c.h.b16 %v261
  %v308 = vunpack.c.l.b16 %v262
  %v309 = vunpack.c.h.b16 %v262
  %v310 = vunpack.c.l.b16 %v263
  %v311 = vunpack.c.h.b16 %v263
  %v312 = vunpack.c.l.b16 %v264
  %v313 = vunpack.c.h.b16 %v264
  %v314 = vunpack.c.l.b16 %v265
  %v315 = vunpack.c.h.b16 %v265
  %v316 = vunpack.c.l.b16 %v266
  %v317 = vunpack.c.h.b16 %v266
  %v318 = vunpack.c.l.b16 %v267
  %v319 = vunpack.c.h.b16 %v267
  %v320 = vunpack.c.l.b16 %v268
  %v321 = vunpack.c.h.b16 %v268
  %v322 = vunpack.c.l.b16 %v269
  %v323 = vunpack.c.h.b16 %v269
  %v324 = vunpack.c.l.b16 %v270
  %v325 = vunpack.c.h.b16 %v270
  %v326 = vunpack.c.l.b16 %v271
  %v327 = vunpack.c.h.b16 %v271
  %v328 = vunpack.c.l.b16 %v272
  %v329 = vunpack.c.h.b16 %v272
  %v330 = vunpack.c.l.b16 %v273
  %v331 = vunpack.c.h.b16 %v273
  %v332 = vunpack.c.l.b16 %v274
  %v333 = vunpack.c.h.b16 %v274
  %v334 = vunpack.c.l.b16 %v275
  %v335 = vunpack.c.h.b16 %v275
  %v336 = vpack.c.b16 %v306, %v304
  %v337 = vpack.c.b16 %v307, %v305
  %v338 = vpack.c.b16 %v310, %v308
  %v339 = vpack.c.b16 %v311, %v309
  %v340 = vpack.c.b16 %v314, %v312
  %v341 = vpack.c.b16 %v315, %v313
  %v342 = vpack.c.b16 %v318, %v316
  %v343 = vpack.c.b16 %v319, %v317
  %v344 = vpack.c.b16 %v322, %v320
  %v345 = vpack.c.b16 %v323, %v321
  %v346 = vpack.c.b16 %v326, %v324
  %v347 = vpack.c.b16 %v327, %v325
  %v348 = vpack.c.b16 %v330, %v328
  %v349 = vpack.c.b16 %v331, %v329
  %v350 = vpack.c.b16 %v334, %v332
  %v351 = vpack.c.b16 %v335, %v333
  %368 = vmatprep.subr.bf16.mxu0 %v337
  %369 = vmatpush1.bf16.msra.mxu0 %v336
  %370 = vmatprep.subr.bf16.mxu0 %v339
  %371 = vmatpush1.bf16.msra.mxu0 %v338
  %372 = vmatprep.subr.bf16.mxu0 %v341
  %373 = vmatpush1.bf16.msra.mxu0 %v340
  %374 = vmatprep.subr.bf16.mxu0 %v343
  %375 = vmatpush1.bf16.msra.mxu0 %v342
  %376 = vmatprep.subr.bf16.mxu0 %v345
  %377 = vmatpush1.bf16.msra.mxu0 %v344
  %378 = vmatprep.subr.bf16.mxu0 %v347
  %379 = vmatpush1.bf16.msra.mxu0 %v346
  %380 = vmatprep.subr.bf16.mxu0 %v349
  %381 = vmatpush1.bf16.msra.mxu0 %v348
  %382 = vmatprep.subr.bf16.mxu0 %v351
  %383 = vmatpush1.bf16.msra.mxu0 %v350
  %384 = vmatprep.subr.bf16.mxu0 0
  %385 = vmatpush1.bf16.msra.mxu0 0
  %386 = vmatprep.subr.bf16.mxu0 0
  %387 = vmatpush1.bf16.msra.mxu0 0
  %388 = vmatprep.subr.bf16.mxu0 0
  %389 = vmatpush1.bf16.msra.mxu0 0
  %390 = vmatprep.subr.bf16.mxu0 0
  %391 = vmatpush1.bf16.msra.mxu0 0
  %392 = vmatprep.subr.bf16.mxu0 0
  %393 = vmatpush1.bf16.msra.mxu0 0
  %394 = vmatprep.subr.bf16.mxu0 0
  %395 = vmatpush1.bf16.msra.mxu0 0
  %396 = vmatprep.subr.bf16.mxu0 0
  %397 = vmatpush1.bf16.msra.mxu0 0
  %398 = vmatprep.subr.bf16.mxu0 0
  %399 = vmatpush1.bf16.msra.mxu0 0
  %400 = vmatprep.mubr.bf16.mxu0 0
  %401 = vmatmul.mubr.bf16.gmra.mrb[0].mxu0 %v252
  %v402 = vpop.f32.mrb[0].mxu0
  %v403 = vadd.f32 %v281, %v402
  %v404 = vpop.f32.mrb[0].mxu0
  %v405 = vadd.f32 %v285, %v404
  %v406 = vpop.f32.mrb[0].mxu0
  %v407 = vadd.f32 %v281, %v406
  %v408 = vpop.f32.mrb[0].mxu0
  %v409 = vadd.f32 %v285, %v408
  %410 = vmatprep.mubr.bf16.mxu0 0
  %411 = vmatmul.mubr.bf16.gmra.mrb[0].mxu0 %v253
  %v412 = vpop.f32.mrb[0].mxu0
  %v413 = vadd.f32 %v281, %v412
  %v414 = vpop.f32.mrb[0].mxu0
  %v415 = vadd.f32 %v285, %v414
  %v416 = vpop.f32.mrb[0].mxu0
  %v417 = vadd.f32 %v281, %v416
  %v418 = vpop.f32.mrb[0].mxu0
  %v419 = vadd.f32 %v285, %v418
  %420 = vmatprep.mubr.bf16.mxu0 0
  %421 = vmatmul.mubr.bf16.gmra.mrb[0].mxu0 %v254
  %v422 = vpop.f32.mrb[0].mxu0
  %v423 = vadd.f32 %v281, %v422
  %v424 = vpop.f32.mrb[0].mxu0
  %v425 = vadd.f32 %v285, %v424
  %v426 = vpop.f32.mrb[0].mxu0
  %v427 = vadd.f32 %v281, %v426
  %v428 = vpop.f32.mrb[0].mxu0
  %v429 = vadd.f32 %v285, %v428
  %430 = vmatprep.mubr.bf16.mxu0 0
  %431 = vmatmul.mubr.bf16.gmra.mrb[0].mxu0 %v255
  %v432 = vpop.f32.mrb[0].mxu0
  %v433 = vadd.f32 %v281, %v432
  %v434 = vpop.f32.mrb[0].mxu0
  %v435 = vadd.f32 %v285, %v434
  %v436 = vpop.f32.mrb[0].mxu0
  %v437 = vadd.f32 %v281, %v436
  %v438 = vpop.f32.mrb[0].mxu0
  %v439 = vadd.f32 %v285, %v438
  %440 = vmatprep.mubr.bf16.mxu0 0
  %441 = vmatmul.mubr.bf16.gmra.mrb[0].mxu0 %v256
  %v442 = vpop.f32.mrb[0].mxu0
  %v443 = vadd.f32 %v281, %v442
  %v444 = vpop.f32.mrb[0].mxu0
  %v445 = vadd.f32 %v285, %v444
  %v446 = vpop.f32.mrb[0].mxu0
  %v447 = vadd.f32 %v281, %v446
  %v448 = vpop.f32.mrb[0].mxu0
  %v449 = vadd.f32 %v285, %v448
  %450 = vmatprep.mubr.bf16.mxu0 0
  %451 = vmatmul.mubr.bf16.gmra.mrb[0].mxu0 %v257
  %v452 = vpop.f32.mrb[0].mxu0
  %v453 = vadd.f32 %v281, %v452
  %v454 = vpop.f32.mrb[0].mxu0
  %v455 = vadd.f32 %v285, %v454
  %v456 = vpop.f32.mrb[0].mxu0
  %v457 = vadd.f32 %v281, %v456
  %v458 = vpop.f32.mrb[0].mxu0
  %v459 = vadd.f32 %v285, %v458
  %460 = vmatprep.mubr.bf16.mxu0 0
  %461 = vmatmul.mubr.bf16.gmra.mrb[0].mxu0 %v258
  %v462 = vpop.f32.mrb[0].mxu0
  %v463 = vadd.f32 %v281, %v462
  %v464 = vpop.f32.mrb[0].mxu0
  %v465 = vadd.f32 %v285, %v464
  %v466 = vpop.f32.mrb[0].mxu0
  %v467 = vadd.f32 %v281, %v466
  %v468 = vpop.f32.mrb[0].mxu0
  %v469 = vadd.f32 %v285, %v468
  %470 = vmatprep.mubr.bf16.mxu0 0
  %471 = vmatmul.mubr.bf16.gmra.mrb[0].mxu0 %v259
  %v472 = vpop.f32.mrb[0].mxu0
  %v473 = vadd.f32 %v281, %v472
  %v474 = vpop.f32.mrb[0].mxu0
  %v475 = vadd.f32 %v285, %v474
  %v476 = vpop.f32.mrb[0].mxu0
  %v477 = vadd.f32 %v281, %v476
  %v478 = vpop.f32.mrb[0].mxu0
  %v479 = vadd.f32 %v285, %v478
  %480 = vdwg.mxu0
  %v481 = vpack.c.bf16 %v407, %v403
  %v482 = vpack.c.bf16 %v417, %v413
  %v483 = vpack.c.bf16 %v427, %v423
  %v484 = vpack.c.bf16 %v437, %v433
  %v485 = vpack.c.bf16 %v447, %v443
  %v486 = vpack.c.bf16 %v457, %v453
  %v487 = vpack.c.bf16 %v467, %v463
  %v488 = vpack.c.bf16 %v477, %v473
  %v497 = vunpack.c.l.b16 %v481
  %v498 = vunpack.c.h.b16 %v481
  %v499 = vunpack.c.l.b16 %v482
  %v500 = vunpack.c.h.b16 %v482
  %v501 = vunpack.c.l.b16 %v483
  %v502 = vunpack.c.h.b16 %v483
  %v503 = vunpack.c.l.b16 %v484
  %v504 = vunpack.c.h.b16 %v484
  %v505 = vunpack.c.l.b16 %v485
  %v506 = vunpack.c.h.b16 %v485
  %v507 = vunpack.c.l.b16 %v486
  %v508 = vunpack.c.h.b16 %v486
  %v509 = vunpack.c.l.b16 %v487
  %v510 = vunpack.c.h.b16 %v487
  %v511 = vunpack.c.l.b16 %v488
  %v512 = vunpack.c.h.b16 %v488
  %v513 = vpack.c.b16 %v497, %v497
  %v514 = vpack.c.b16 %v498, %v498
  %v515 = vpack.c.b16 %v499, %v499
  %v516 = vpack.c.b16 %v500, %v500
  %v517 = vpack.c.b16 %v501, %v501
  %v518 = vpack.c.b16 %v502, %v502
  %v519 = vpack.c.b16 %v503, %v503
  %v520 = vpack.c.b16 %v504, %v504
  %v521 = vpack.c.b16 %v505, %v505
  %v522 = vpack.c.b16 %v506, %v506
  %v523 = vpack.c.b16 %v507, %v507
  %v524 = vpack.c.b16 %v508, %v508
  %v525 = vpack.c.b16 %v509, %v509
  %v526 = vpack.c.b16 %v510, %v510
  %v527 = vpack.c.b16 %v511, %v511
  %v528 = vpack.c.b16 %v512, %v512
  %545 = vst [vmem:[%s6] sm:$0xf] %v513
  %546 = vst [vmem:[%s6 + $0x4] sm:$0xf] %v514
  %547 = vst [vmem:[%s6 + $0x8] sm:$0xf] %v515
  %548 = vst [vmem:[%s6 + $0xc] sm:$0xf] %v516
  %549 = vst [vmem:[%s6 + $0x10] sm:$0xf] %v517
  %550 = vst [vmem:[%s6 + $0x14] sm:$0xf] %v518
  %551 = vst [vmem:[%s6 + $0x18] sm:$0xf] %v519
  %552 = vst [vmem:[%s6 + $0x1c] sm:$0xf] %v520
  %553 = vst [vmem:[%s6 + $0x20] sm:$0xf] %v521
  %554 = vst [vmem:[%s6 + $0x24] sm:$0xf] %v522
  %555 = vst [vmem:[%s6 + $0x28] sm:$0xf] %v523
  %556 = vst [vmem:[%s6 + $0x2c] sm:$0xf] %v524
  %557 = vst [vmem:[%s6 + $0x30] sm:$0xf] %v525
  %558 = vst [vmem:[%s6 + $0x34] sm:$0xf] %v526
  %559 = vst [vmem:[%s6 + $0x38] sm:$0xf] %v527
  %560 = vst [vmem:[%s6 + $0x3c] sm:$0xf] %v528
  %v561 = vpack.c.bf16 %v409, %v405
  %v562 = vpack.c.bf16 %v419, %v415
  %v563 = vpack.c.bf16 %v429, %v425
  %v564 = vpack.c.bf16 %v439, %v435
  %v565 = vpack.c.bf16 %v449, %v445
  %v566 = vpack.c.bf16 %v459, %v455
  %v567 = vpack.c.bf16 %v469, %v465
  %v568 = vpack.c.bf16 %v479, %v475
  %v577 = vunpack.c.l.b16 %v561
  %v578 = vunpack.c.h.b16 %v561
  %v579 = vunpack.c.l.b16 %v562
  %v580 = vunpack.c.h.b16 %v562
  %v581 = vunpack.c.l.b16 %v563
  %v582 = vunpack.c.h.b16 %v563
  %v583 = vunpack.c.l.b16 %v564
  %v584 = vunpack.c.h.b16 %v564
  %v585 = vunpack.c.l.b16 %v565
  %v586 = vunpack.c.h.b16 %v565
  %v587 = vunpack.c.l.b16 %v566
  %v588 = vunpack.c.h.b16 %v566
  %v589 = vunpack.c.l.b16 %v567
  %v590 = vunpack.c.h.b16 %v567
  %v591 = vunpack.c.l.b16 %v568
  %v592 = vunpack.c.h.b16 %v568
  %v593 = vpack.c.b16 %v577, %v577
  %v594 = vpack.c.b16 %v578, %v578
  %v595 = vpack.c.b16 %v579, %v579
  %v596 = vpack.c.b16 %v580, %v580
  %v597 = vpack.c.b16 %v581, %v581
  %v598 = vpack.c.b16 %v582, %v582
  %v599 = vpack.c.b16 %v583, %v583
  %v600 = vpack.c.b16 %v584, %v584
  %v601 = vpack.c.b16 %v585, %v585
  %v602 = vpack.c.b16 %v586, %v586
  %v603 = vpack.c.b16 %v587, %v587
  %v604 = vpack.c.b16 %v588, %v588
  %v605 = vpack.c.b16 %v589, %v589
  %v606 = vpack.c.b16 %v590, %v590
  %v607 = vpack.c.b16 %v591, %v591
  %v608 = vpack.c.b16 %v592, %v592
  %625 = vst [vmem:[%s7] sm:$0xf] %v593
  %626 = vst [vmem:[%s7 + $0x4] sm:$0xf] %v594
  %627 = vst [vmem:[%s7 + $0x8] sm:$0xf] %v595
  %628 = vst [vmem:[%s7 + $0xc] sm:$0xf] %v596
  %629 = vst [vmem:[%s7 + $0x10] sm:$0xf] %v597
  %630 = vst [vmem:[%s7 + $0x14] sm:$0xf] %v598
  %631 = vst [vmem:[%s7 + $0x18] sm:$0xf] %v599
  %632 = vst [vmem:[%s7 + $0x1c] sm:$0xf] %v600
  %633 = vst [vmem:[%s7 + $0x20] sm:$0xf] %v601
  %634 = vst [vmem:[%s7 + $0x24] sm:$0xf] %v602
  %635 = vst [vmem:[%s7 + $0x28] sm:$0xf] %v603
  %636 = vst [vmem:[%s7 + $0x2c] sm:$0xf] %v604
  %637 = vst [vmem:[%s7 + $0x30] sm:$0xf] %v605
  %638 = vst [vmem:[%s7 + $0x34] sm:$0xf] %v606
  %639 = vst [vmem:[%s7 + $0x38] sm:$0xf] %v607
  %640 = vst [vmem:[%s7 + $0x3c] sm:$0xf] %v608
  %v641 = vld [vmem:[%s4] sm:$0xf]
  %v642 = vld [vmem:[%s4 + $0x4] sm:$0xf]
  %v643 = vld [vmem:[%s4 + $0x8] sm:$0xf]
  %v644 = vld [vmem:[%s4 + $0xc] sm:$0xf]
  %v645 = vld [vmem:[%s4 + $0x10] sm:$0xf]
  %v646 = vld [vmem:[%s4 + $0x14] sm:$0xf]
  %v647 = vld [vmem:[%s4 + $0x18] sm:$0xf]
  %v648 = vld [vmem:[%s4 + $0x1c] sm:$0xf]
  %v649 = vld [vmem:[%s4 + $0x20] sm:$0xf]
  %v650 = vld [vmem:[%s4 + $0x24] sm:$0xf]
  %v651 = vld [vmem:[%s4 + $0x28] sm:$0xf]
  %v652 = vld [vmem:[%s4 + $0x2c] sm:$0xf]
  %v653 = vld [vmem:[%s4 + $0x30] sm:$0xf]
  %v654 = vld [vmem:[%s4 + $0x34] sm:$0xf]
  %v655 = vld [vmem:[%s4 + $0x38] sm:$0xf]
  %v656 = vld [vmem:[%s4 + $0x3c] sm:$0xf]
  %v657 = vld [vmem:[%s5] sm:$0x1]
  %v659 = vlaneseq
  %v660 = vshrl.u32 %v659, 7
  %v661 = vsub.s32 0, %v660
  %v662 = vrot.slane %v657, %v661
  %v680 = vunpack.c.l.b16 %v641
  %v681 = vunpack.c.l.b16 %v642
  %v682 = vunpack.c.l.b16 %v643
  %v683 = vunpack.c.l.b16 %v644
  %v684 = vunpack.c.l.b16 %v645
  %v685 = vunpack.c.l.b16 %v646
  %v686 = vunpack.c.l.b16 %v647
  %v687 = vunpack.c.l.b16 %v648
  %v688 = vunpack.c.l.b16 %v649
  %v689 = vunpack.c.l.b16 %v650
  %v690 = vunpack.c.l.b16 %v651
  %v691 = vunpack.c.l.b16 %v652
  %v692 = vunpack.c.l.b16 %v653
  %v693 = vunpack.c.l.b16 %v654
  %v694 = vunpack.c.l.b16 %v655
  %v695 = vunpack.c.l.b16 %v656
  %v696 = vpack.c.b16 %v681, %v680
  %v697 = vpack.c.b16 %v683, %v682
  %v698 = vpack.c.b16 %v685, %v684
  %v699 = vpack.c.b16 %v687, %v686
  %v700 = vpack.c.b16 %v689, %v688
  %v701 = vpack.c.b16 %v691, %v690
  %v702 = vpack.c.b16 %v693, %v692
  %v703 = vpack.c.b16 %v695, %v694
  %712 = vmatprep.subr.bf16.mxu0 0
  %713 = vmatpush1.bf16.msra.mxu0 %v696
  %714 = vmatprep.subr.bf16.mxu0 0
  %715 = vmatpush1.bf16.msra.mxu0 %v697
  %716 = vmatprep.subr.bf16.mxu0 0
  %717 = vmatpush1.bf16.msra.mxu0 %v698
  %718 = vmatprep.subr.bf16.mxu0 0
  %719 = vmatpush1.bf16.msra.mxu0 %v699
  %720 = vmatprep.subr.bf16.mxu0 0
  %721 = vmatpush1.bf16.msra.mxu0 %v700
  %722 = vmatprep.subr.bf16.mxu0 0
  %723 = vmatpush1.bf16.msra.mxu0 %v701
  %724 = vmatprep.subr.bf16.mxu0 0
  %725 = vmatpush1.bf16.msra.mxu0 %v702
  %726 = vmatprep.subr.bf16.mxu0 0
  %727 = vmatpush1.bf16.msra.mxu0 %v703
  %728 = vmatprep.subr.bf16.mxu0 0
  %729 = vmatpush1.bf16.msra.mxu0 0
  %730 = vmatprep.subr.bf16.mxu0 0
  %731 = vmatpush1.bf16.msra.mxu0 0
  %732 = vmatprep.subr.bf16.mxu0 0
  %733 = vmatpush1.bf16.msra.mxu0 0
  %734 = vmatprep.subr.bf16.mxu0 0
  %735 = vmatpush1.bf16.msra.mxu0 0
  %736 = vmatprep.subr.bf16.mxu0 0
  %737 = vmatpush1.bf16.msra.mxu0 0
  %738 = vmatprep.subr.bf16.mxu0 0
  %739 = vmatpush1.bf16.msra.mxu0 0
  %740 = vmatprep.subr.bf16.mxu0 0
  %741 = vmatpush1.bf16.msra.mxu0 0
  %742 = vmatprep.subr.bf16.mxu0 0
  %743 = vmatpush1.bf16.msra.mxu0 0
  %744 = vmatprep.mubr.bf16.mxu0 0
  %745 = vmatmul.mubr.bf16.gmra.mrb[0].mxu0 %v252
  %v746 = vpop.f32.mrb[0].mxu0
  %v747 = vadd.f32 %v662, %v746
  %v748 = vpop.f32.mrb[0].mxu0
  %v749 = vpop.f32.mrb[0].mxu0
  %v750 = vadd.f32 %v662, %v749
  %v751 = vpop.f32.mrb[0].mxu0
  %752 = vmatprep.mubr.bf16.mxu0 0
  %753 = vmatmul.mubr.bf16.gmra.mrb[0].mxu0 %v253
  %v754 = vpop.f32.mrb[0].mxu0
  %v755 = vadd.f32 %v662, %v754
  %v756 = vpop.f32.mrb[0].mxu0
  %v757 = vpop.f32.mrb[0].mxu0
  %v758 = vadd.f32 %v662, %v757
  %v759 = vpop.f32.mrb[0].mxu0
  %760 = vmatprep.mubr.bf16.mxu0 0
  %761 = vmatmul.mubr.bf16.gmra.mrb[0].mxu0 %v254
  %v762 = vpop.f32.mrb[0].mxu0
  %v763 = vadd.f32 %v662, %v762
  %v764 = vpop.f32.mrb[0].mxu0
  %v765 = vpop.f32.mrb[0].mxu0
  %v766 = vadd.f32 %v662, %v765
  %v767 = vpop.f32.mrb[0].mxu0
  %768 = vmatprep.mubr.bf16.mxu0 0
  %769 = vmatmul.mubr.bf16.gmra.mrb[0].mxu0 %v255
  %v770 = vpop.f32.mrb[0].mxu0
  %v771 = vadd.f32 %v662, %v770
  %v772 = vpop.f32.mrb[0].mxu0
  %v773 = vpop.f32.mrb[0].mxu0
  %v774 = vadd.f32 %v662, %v773
  %v775 = vpop.f32.mrb[0].mxu0
  %776 = vmatprep.mubr.bf16.mxu0 0
  %777 = vmatmul.mubr.bf16.gmra.mrb[0].mxu0 %v256
  %v778 = vpop.f32.mrb[0].mxu0
  %v779 = vadd.f32 %v662, %v778
  %v780 = vpop.f32.mrb[0].mxu0
  %v781 = vpop.f32.mrb[0].mxu0
  %v782 = vadd.f32 %v662, %v781
  %v783 = vpop.f32.mrb[0].mxu0
  %784 = vmatprep.mubr.bf16.mxu0 0
  %785 = vmatmul.mubr.bf16.gmra.mrb[0].mxu0 %v257
  %v786 = vpop.f32.mrb[0].mxu0
  %v787 = vadd.f32 %v662, %v786
  %v788 = vpop.f32.mrb[0].mxu0
  %v789 = vpop.f32.mrb[0].mxu0
  %v790 = vadd.f32 %v662, %v789
  %v791 = vpop.f32.mrb[0].mxu0
  %792 = vmatprep.mubr.bf16.mxu0 0
  %793 = vmatmul.mubr.bf16.gmra.mrb[0].mxu0 %v258
  %v794 = vpop.f32.mrb[0].mxu0
  %v795 = vadd.f32 %v662, %v794
  %v796 = vpop.f32.mrb[0].mxu0
  %v797 = vpop.f32.mrb[0].mxu0
  %v798 = vadd.f32 %v662, %v797
  %v799 = vpop.f32.mrb[0].mxu0
  %800 = vmatprep.mubr.bf16.mxu0 0
  %801 = vmatmul.mubr.bf16.gmra.mrb[0].mxu0 %v259
  %v802 = vpop.f32.mrb[0].mxu0
  %v803 = vadd.f32 %v662, %v802
  %v804 = vpop.f32.mrb[0].mxu0
  %v805 = vpop.f32.mrb[0].mxu0
  %v806 = vadd.f32 %v662, %v805
  %v807 = vpop.f32.mrb[0].mxu0
  %808 = vdwg.mxu0
  %v809 = vmax.f32 %v747, 0.0
  %v810 = vmax.f32 %v750, 0.0
  %v811 = vmax.f32 %v755, 0.0
  %v812 = vmax.f32 %v758, 0.0
  %v813 = vmax.f32 %v763, 0.0
  %v814 = vmax.f32 %v766, 0.0
  %v815 = vmax.f32 %v771, 0.0
  %v816 = vmax.f32 %v774, 0.0
  %v817 = vmax.f32 %v779, 0.0
  %v818 = vmax.f32 %v782, 0.0
  %v819 = vmax.f32 %v787, 0.0
  %v820 = vmax.f32 %v790, 0.0
  %v821 = vmax.f32 %v795, 0.0
  %v822 = vmax.f32 %v798, 0.0
  %v823 = vmax.f32 %v803, 0.0
  %v824 = vmax.f32 %v806, 0.0
  %v825 = vpack.c.bf16 %v810, %v809
  %v826 = vpack.c.bf16 %v812, %v811
  %v827 = vpack.c.bf16 %v814, %v813
  %v828 = vpack.c.bf16 %v816, %v815
  %v829 = vpack.c.bf16 %v818, %v817
  %v830 = vpack.c.bf16 %v820, %v819
  %v831 = vpack.c.bf16 %v822, %v821
  %v832 = vpack.c.bf16 %v824, %v823
  %s833 = scalar_lea.vmem %s4, 64
  %v834 = vld [vmem:[%s833] sm:$0xf]
  %v835 = vld [vmem:[%s833 + $0x4] sm:$0xf]
  %v836 = vld [vmem:[%s833 + $0x8] sm:$0xf]
  %v837 = vld [vmem:[%s833 + $0xc] sm:$0xf]
  %v838 = vld [vmem:[%s833 + $0x10] sm:$0xf]
  %v839 = vld [vmem:[%s833 + $0x14] sm:$0xf]
  %v840 = vld [vmem:[%s833 + $0x18] sm:$0xf]
  %v841 = vld [vmem:[%s833 + $0x1c] sm:$0xf]
  %v842 = vld [vmem:[%s833 + $0x20] sm:$0xf]
  %v843 = vld [vmem:[%s833 + $0x24] sm:$0xf]
  %v844 = vld [vmem:[%s833 + $0x28] sm:$0xf]
  %v845 = vld [vmem:[%s833 + $0x2c] sm:$0xf]
  %v846 = vld [vmem:[%s833 + $0x30] sm:$0xf]
  %v847 = vld [vmem:[%s833 + $0x34] sm:$0xf]
  %v848 = vld [vmem:[%s833 + $0x38] sm:$0xf]
  %v849 = vld [vmem:[%s833 + $0x3c] sm:$0xf]
  %v866 = vunpack.c.l.b16 %v834
  %v867 = vunpack.c.l.b16 %v835
  %v868 = vunpack.c.l.b16 %v836
  %v869 = vunpack.c.l.b16 %v837
  %v870 = vunpack.c.l.b16 %v838
  %v871 = vunpack.c.l.b16 %v839
  %v872 = vunpack.c.l.b16 %v840
  %v873 = vunpack.c.l.b16 %v841
  %v874 = vunpack.c.l.b16 %v842
  %v875 = vunpack.c.l.b16 %v843
  %v876 = vunpack.c.l.b16 %v844
  %v877 = vunpack.c.l.b16 %v845
  %v878 = vunpack.c.l.b16 %v846
  %v879 = vunpack.c.l.b16 %v847
  %v880 = vunpack.c.l.b16 %v848
  %v881 = vunpack.c.l.b16 %v849
  %v882 = vpack.c.b16 %v867, %v866
  %v883 = vpack.c.b16 %v869, %v868
  %v884 = vpack.c.b16 %v871, %v870
  %v885 = vpack.c.b16 %v873, %v872
  %v886 = vpack.c.b16 %v875, %v874
  %v887 = vpack.c.b16 %v877, %v876
  %v888 = vpack.c.b16 %v879, %v878
  %v889 = vpack.c.b16 %v881, %v880
  %898 = vmatprep.subr.bf16.mxu0 0
  %899 = vmatpush1.bf16.msra.mxu0 %v882
  %900 = vmatprep.subr.bf16.mxu0 0
  %901 = vmatpush1.bf16.msra.mxu0 %v883
  %902 = vmatprep.subr.bf16.mxu0 0
  %903 = vmatpush1.bf16.msra.mxu0 %v884
  %904 = vmatprep.subr.bf16.mxu0 0
  %905 = vmatpush1.bf16.msra.mxu0 %v885
  %906 = vmatprep.subr.bf16.mxu0 0
  %907 = vmatpush1.bf16.msra.mxu0 %v886
  %908 = vmatprep.subr.bf16.mxu0 0
  %909 = vmatpush1.bf16.msra.mxu0 %v887
  %910 = vmatprep.subr.bf16.mxu0 0
  %911 = vmatpush1.bf16.msra.mxu0 %v888
  %912 = vmatprep.subr.bf16.mxu0 0
  %913 = vmatpush1.bf16.msra.mxu0 %v889
  %914 = vmatprep.subr.bf16.mxu0 0
  %915 = vmatpush1.bf16.msra.mxu0 0
  %916 = vmatprep.subr.bf16.mxu0 0
  %917 = vmatpush1.bf16.msra.mxu0 0
  %918 = vmatprep.subr.bf16.mxu0 0
  %919 = vmatpush1.bf16.msra.mxu0 0
  %920 = vmatprep.subr.bf16.mxu0 0
  %921 = vmatpush1.bf16.msra.mxu0 0
  %922 = vmatprep.subr.bf16.mxu0 0
  %923 = vmatpush1.bf16.msra.mxu0 0
  %924 = vmatprep.subr.bf16.mxu0 0
  %925 = vmatpush1.bf16.msra.mxu0 0
  %926 = vmatprep.subr.bf16.mxu0 0
  %927 = vmatpush1.bf16.msra.mxu0 0
  %928 = vmatprep.subr.bf16.mxu0 0
  %929 = vmatpush1.bf16.msra.mxu0 0
  %930 = vmatprep.mubr.bf16.mxu0 0
  %931 = vmatmul.mubr.bf16.gmra.mrb[0].mxu0 %v825
  %v932 = vpop.f32.mrb[0].mxu0
  %v933 = vadd.f32 0.0, %v932
  %v934 = vpop.f32.mrb[0].mxu0
  %v935 = vpop.f32.mrb[0].mxu0
  %v936 = vadd.f32 0.0, %v935
  %v937 = vpop.f32.mrb[0].mxu0
  %938 = vmatprep.mubr.bf16.mxu0 0
  %939 = vmatmul.mubr.bf16.gmra.mrb[0].mxu0 %v826
  %v940 = vpop.f32.mrb[0].mxu0
  %v941 = vadd.f32 0.0, %v940
  %v942 = vpop.f32.mrb[0].mxu0
  %v943 = vpop.f32.mrb[0].mxu0
  %v944 = vadd.f32 0.0, %v943
  %v945 = vpop.f32.mrb[0].mxu0
  %946 = vmatprep.mubr.bf16.mxu0 0
  %947 = vmatmul.mubr.bf16.gmra.mrb[0].mxu0 %v827
  %v948 = vpop.f32.mrb[0].mxu0
  %v949 = vadd.f32 0.0, %v948
  %v950 = vpop.f32.mrb[0].mxu0
  %v951 = vpop.f32.mrb[0].mxu0
  %v952 = vadd.f32 0.0, %v951
  %v953 = vpop.f32.mrb[0].mxu0
  %954 = vmatprep.mubr.bf16.mxu0 0
  %955 = vmatmul.mubr.bf16.gmra.mrb[0].mxu0 %v828
  %v956 = vpop.f32.mrb[0].mxu0
  %v957 = vadd.f32 0.0, %v956
  %v958 = vpop.f32.mrb[0].mxu0
  %v959 = vpop.f32.mrb[0].mxu0
  %v960 = vadd.f32 0.0, %v959
  %v961 = vpop.f32.mrb[0].mxu0
  %962 = vmatprep.mubr.bf16.mxu0 0
  %963 = vmatmul.mubr.bf16.gmra.mrb[0].mxu0 %v829
  %v964 = vpop.f32.mrb[0].mxu0
  %v965 = vadd.f32 0.0, %v964
  %v966 = vpop.f32.mrb[0].mxu0
  %v967 = vpop.f32.mrb[0].mxu0
  %v968 = vadd.f32 0.0, %v967
  %v969 = vpop.f32.mrb[0].mxu0
  %970 = vmatprep.mubr.bf16.mxu0 0
  %971 = vmatmul.mubr.bf16.gmra.mrb[0].mxu0 %v830
  %v972 = vpop.f32.mrb[0].mxu0
  %v973 = vadd.f32 0.0, %v972
  %v974 = vpop.f32.mrb[0].mxu0
  %v975 = vpop.f32.mrb[0].mxu0
  %v976 = vadd.f32 0.0, %v975
  %v977 = vpop.f32.mrb[0].mxu0
  %978 = vmatprep.mubr.bf16.mxu0 0
  %979 = vmatmul.mubr.bf16.gmra.mrb[0].mxu0 %v831
  %v980 = vpop.f32.mrb[0].mxu0
  %v981 = vadd.f32 0.0, %v980
  %v982 = vpop.f32.mrb[0].mxu0
  %v983 = vpop.f32.mrb[0].mxu0
  %v984 = vadd.f32 0.0, %v983
  %v985 = vpop.f32.mrb[0].mxu0
  %986 = vmatprep.mubr.bf16.mxu0 0
  %987 = vmatmul.mubr.bf16.gmra.mrb[0].mxu0 %v832
  %v988 = vpop.f32.mrb[0].mxu0
  %v989 = vadd.f32 0.0, %v988
  %v990 = vpop.f32.mrb[0].mxu0
  %v991 = vpop.f32.mrb[0].mxu0
  %v992 = vadd.f32 0.0, %v991
  %v993 = vpop.f32.mrb[0].mxu0
  %994 = vdwg.mxu0
  %v995 = vpack.c.bf16 %v936, %v933
  %v996 = vpack.c.bf16 %v944, %v941
  %v997 = vpack.c.bf16 %v952, %v949
  %v998 = vpack.c.bf16 %v960, %v957
  %v999 = vpack.c.bf16 %v968, %v965
  %v1000 = vpack.c.bf16 %v976, %v973
  %v1001 = vpack.c.bf16 %v984, %v981
  %v1002 = vpack.c.bf16 %v992, %v989
  %s1003 = scalar_lea.vmem %s5, 1
  %v1004 = vld [vmem:[%s1003] sm:$0x1]
  %v1006 = vlaneseq
  %v1007 = vshrl.u32 %v1006, 7
  %v1008 = vsub.s32 0, %v1007
  %v1009 = vrot.slane %v1004, %v1008
  %1011 = vmatprep.subr.bf16.mxu0 0
  %1012 = vmatpush1.bf16.msra.mxu0 %v995
  %1013 = vmatprep.subr.bf16.mxu0 0
  %1014 = vmatpush1.bf16.msra.mxu0 %v996
  %1015 = vmatprep.subr.bf16.mxu0 0
  %1016 = vmatpush1.bf16.msra.mxu0 %v997
  %1017 = vmatprep.subr.bf16.mxu0 0
  %1018 = vmatpush1.bf16.msra.mxu0 %v998
  %1019 = vmatprep.subr.bf16.mxu0 0
  %1020 = vmatpush1.bf16.msra.mxu0 %v999
  %1021 = vmatprep.subr.bf16.mxu0 0
  %1022 = vmatpush1.bf16.msra.mxu0 %v1000
  %1023 = vmatprep.subr.bf16.mxu0 0
  %1024 = vmatpush1.bf16.msra.mxu0 %v1001
  %1025 = vmatprep.subr.bf16.mxu0 0
  %1026 = vmatpush1.bf16.msra.mxu0 %v1002
  %1027 = vmatprep.subr.bf16.mxu0 0
  %1028 = vmatpush1.bf16.msra.mxu0 0
  %1029 = vmatprep.subr.bf16.mxu0 0
  %1030 = vmatpush1.bf16.msra.mxu0 0
  %1031 = vmatprep.subr.bf16.mxu0 0
  %1032 = vmatpush1.bf16.msra.mxu0 0
  %1033 = vmatprep.subr.bf16.mxu0 0
  %1034 = vmatpush1.bf16.msra.mxu0 0
  %1035 = vmatprep.subr.bf16.mxu0 0
  %1036 = vmatpush1.bf16.msra.mxu0 0
  %1037 = vmatprep.subr.bf16.mxu0 0
  %1038 = vmatpush1.bf16.msra.mxu0 0
  %1039 = vmatprep.subr.bf16.mxu0 0
  %1040 = vmatpush1.bf16.msra.mxu0 0
  %1041 = vmatprep.subr.bf16.mxu0 0
  %1042 = vmatpush1.bf16.msra.mxu0 0
  %1043 = vmatprep.mubr.bf16.mxu0 0
  %1044 = vmatmul.mubr.bf16.gmra.mrb[0].mxu0 %v91
  %v1045 = vpop.f32.mrb[0].mxu0
  %v1046 = vadd.f32 %v1009, %v1045
  %v1047 = vpop.f32.mrb[0].mxu0
  %v1048 = vpop.f32.mrb[0].mxu0
  %v1049 = vadd.f32 %v1009, %v1048
  %v1050 = vpop.f32.mrb[0].mxu0
  %1051 = vmatprep.mubr.bf16.mxu0 0
  %1052 = vmatmul.mubr.bf16.gmra.mrb[0].mxu0 %v92
  %v1053 = vpop.f32.mrb[0].mxu0
  %v1054 = vadd.f32 %v1009, %v1053
  %v1055 = vpop.f32.mrb[0].mxu0
  %v1056 = vpop.f32.mrb[0].mxu0
  %v1057 = vadd.f32 %v1009, %v1056
  %v1058 = vpop.f32.mrb[0].mxu0
  %1059 = vmatprep.mubr.bf16.mxu0 0
  %1060 = vmatmul.mubr.bf16.gmra.mrb[0].mxu0 %v93
  %v1061 = vpop.f32.mrb[0].mxu0
  %v1062 = vadd.f32 %v1009, %v1061
  %v1063 = vpop.f32.mrb[0].mxu0
  %v1064 = vpop.f32.mrb[0].mxu0
  %v1065 = vadd.f32 %v1009, %v1064
  %v1066 = vpop.f32.mrb[0].mxu0
  %1067 = vmatprep.mubr.bf16.mxu0 0
  %1068 = vmatmul.mubr.bf16.gmra.mrb[0].mxu0 %v94
  %v1069 = vpop.f32.mrb[0].mxu0
  %v1070 = vadd.f32 %v1009, %v1069
  %v1071 = vpop.f32.mrb[0].mxu0
  %v1072 = vpop.f32.mrb[0].mxu0
  %v1073 = vadd.f32 %v1009, %v1072
  %v1074 = vpop.f32.mrb[0].mxu0
  %1075 = vmatprep.mubr.bf16.mxu0 0
  %1076 = vmatmul.mubr.bf16.gmra.mrb[0].mxu0 %v95
  %v1077 = vpop.f32.mrb[0].mxu0
  %v1078 = vadd.f32 %v1009, %v1077
  %v1079 = vpop.f32.mrb[0].mxu0
  %v1080 = vpop.f32.mrb[0].mxu0
  %v1081 = vadd.f32 %v1009, %v1080
  %v1082 = vpop.f32.mrb[0].mxu0
  %1083 = vmatprep.mubr.bf16.mxu0 0
  %1084 = vmatmul.mubr.bf16.gmra.mrb[0].mxu0 %v96
  %v1085 = vpop.f32.mrb[0].mxu0
  %v1086 = vadd.f32 %v1009, %v1085
  %v1087 = vpop.f32.mrb[0].mxu0
  %v1088 = vpop.f32.mrb[0].mxu0
  %v1089 = vadd.f32 %v1009, %v1088
  %v1090 = vpop.f32.mrb[0].mxu0
  %1091 = vmatprep.mubr.bf16.mxu0 0
  %1092 = vmatmul.mubr.bf16.gmra.mrb[0].mxu0 %v97
  %v1093 = vpop.f32.mrb[0].mxu0
  %v1094 = vadd.f32 %v1009, %v1093
  %v1095 = vpop.f32.mrb[0].mxu0
  %v1096 = vpop.f32.mrb[0].mxu0
  %v1097 = vadd.f32 %v1009, %v1096
  %v1098 = vpop.f32.mrb[0].mxu0
  %1099 = vmatprep.mubr.bf16.mxu0 0
  %1100 = vmatmul.mubr.bf16.gmra.mrb[0].mxu0 %v98
  %v1101 = vpop.f32.mrb[0].mxu0
  %v1102 = vadd.f32 %v1009, %v1101
  %v1103 = vpop.f32.mrb[0].mxu0
  %v1104 = vpop.f32.mrb[0].mxu0
  %v1105 = vadd.f32 %v1009, %v1104
  %v1106 = vpop.f32.mrb[0].mxu0
  %1107 = vdwg.mxu0
  %v1108 = vmax.f32 %v1046, 0.0
  %v1109 = vmax.f32 %v1049, 0.0
  %v1110 = vmax.f32 %v1054, 0.0
  %v1111 = vmax.f32 %v1057, 0.0
  %v1112 = vmax.f32 %v1062, 0.0
  %v1113 = vmax.f32 %v1065, 0.0
  %v1114 = vmax.f32 %v1070, 0.0
  %v1115 = vmax.f32 %v1073, 0.0
  %v1116 = vmax.f32 %v1078, 0.0
  %v1117 = vmax.f32 %v1081, 0.0
  %v1118 = vmax.f32 %v1086, 0.0
  %v1119 = vmax.f32 %v1089, 0.0
  %v1120 = vmax.f32 %v1094, 0.0
  %v1121 = vmax.f32 %v1097, 0.0
  %v1122 = vmax.f32 %v1102, 0.0
  %v1123 = vmax.f32 %v1105, 0.0
  %v1124 = vpack.c.bf16 %v1109, %v1108
  %v1125 = vpack.c.bf16 %v1111, %v1110
  %v1126 = vpack.c.bf16 %v1113, %v1112
  %v1127 = vpack.c.bf16 %v1115, %v1114
  %v1128 = vpack.c.bf16 %v1117, %v1116
  %v1129 = vpack.c.bf16 %v1119, %v1118
  %v1130 = vpack.c.bf16 %v1121, %v1120
  %v1131 = vpack.c.bf16 %v1123, %v1122
  %s1132 = scalar_lea.vmem %s4, 128
  %v1133 = vld [vmem:[%s1132] sm:$0xf]
  %v1134 = vld [vmem:[%s1132 + $0x4] sm:$0xf]
  %v1135 = vld [vmem:[%s1132 + $0x8] sm:$0xf]
  %v1136 = vld [vmem:[%s1132 + $0xc] sm:$0xf]
  %v1137 = vld [vmem:[%s1132 + $0x10] sm:$0xf]
  %v1138 = vld [vmem:[%s1132 + $0x14] sm:$0xf]
  %v1139 = vld [vmem:[%s1132 + $0x18] sm:$0xf]
  %v1140 = vld [vmem:[%s1132 + $0x1c] sm:$0xf]
  %v1141 = vld [vmem:[%s1132 + $0x20] sm:$0xf]
  %v1142 = vld [vmem:[%s1132 + $0x24] sm:$0xf]
  %v1143 = vld [vmem:[%s1132 + $0x28] sm:$0xf]
  %v1144 = vld [vmem:[%s1132 + $0x2c] sm:$0xf]
  %v1145 = vld [vmem:[%s1132 + $0x30] sm:$0xf]
  %v1146 = vld [vmem:[%s1132 + $0x34] sm:$0xf]
  %v1147 = vld [vmem:[%s1132 + $0x38] sm:$0xf]
  %v1148 = vld [vmem:[%s1132 + $0x3c] sm:$0xf]
  %v1165 = vunpack.c.l.b16 %v1133
  %v1166 = vunpack.c.l.b16 %v1134
  %v1167 = vunpack.c.l.b16 %v1135
  %v1168 = vunpack.c.l.b16 %v1136
  %v1169 = vunpack.c.l.b16 %v1137
  %v1170 = vunpack.c.l.b16 %v1138
  %v1171 = vunpack.c.l.b16 %v1139
  %v1172 = vunpack.c.l.b16 %v1140
  %v1173 = vunpack.c.l.b16 %v1141
  %v1174 = vunpack.c.l.b16 %v1142
  %v1175 = vunpack.c.l.b16 %v1143
  %v1176 = vunpack.c.l.b16 %v1144
  %v1177 = vunpack.c.l.b16 %v1145
  %v1178 = vunpack.c.l.b16 %v1146
  %v1179 = vunpack.c.l.b16 %v1147
  %v1180 = vunpack.c.l.b16 %v1148
  %v1181 = vpack.c.b16 %v1166, %v1165
  %v1182 = vpack.c.b16 %v1168, %v1167
  %v1183 = vpack.c.b16 %v1170, %v1169
  %v1184 = vpack.c.b16 %v1172, %v1171
  %v1185 = vpack.c.b16 %v1174, %v1173
  %v1186 = vpack.c.b16 %v1176, %v1175
  %v1187 = vpack.c.b16 %v1178, %v1177
  %v1188 = vpack.c.b16 %v1180, %v1179
  %1197 = vmatprep.subr.bf16.mxu0 0
  %1198 = vmatpush1.bf16.msra.mxu0 %v1181
  %1199 = vmatprep.subr.bf16.mxu0 0
  %1200 = vmatpush1.bf16.msra.mxu0 %v1182
  %1201 = vmatprep.subr.bf16.mxu0 0
  %1202 = vmatpush1.bf16.msra.mxu0 %v1183
  %1203 = vmatprep.subr.bf16.mxu0 0
  %1204 = vmatpush1.bf16.msra.mxu0 %v1184
  %1205 = vmatprep.subr.bf16.mxu0 0
  %1206 = vmatpush1.bf16.msra.mxu0 %v1185
  %1207 = vmatprep.subr.bf16.mxu0 0
  %1208 = vmatpush1.bf16.msra.mxu0 %v1186
  %1209 = vmatprep.subr.bf16.mxu0 0
  %1210 = vmatpush1.bf16.msra.mxu0 %v1187
  %1211 = vmatprep.subr.bf16.mxu0 0
  %1212 = vmatpush1.bf16.msra.mxu0 %v1188
  %1213 = vmatprep.subr.bf16.mxu0 0
  %1214 = vmatpush1.bf16.msra.mxu0 0
  %1215 = vmatprep.subr.bf16.mxu0 0
  %1216 = vmatpush1.bf16.msra.mxu0 0
  %1217 = vmatprep.subr.bf16.mxu0 0
  %1218 = vmatpush1.bf16.msra.mxu0 0
  %1219 = vmatprep.subr.bf16.mxu0 0
  %1220 = vmatpush1.bf16.msra.mxu0 0
  %1221 = vmatprep.subr.bf16.mxu0 0
  %1222 = vmatpush1.bf16.msra.mxu0 0
  %1223 = vmatprep.subr.bf16.mxu0 0
  %1224 = vmatpush1.bf16.msra.mxu0 0
  %1225 = vmatprep.subr.bf16.mxu0 0
  %1226 = vmatpush1.bf16.msra.mxu0 0
  %1227 = vmatprep.subr.bf16.mxu0 0
  %1228 = vmatpush1.bf16.msra.mxu0 0
  %1229 = vmatprep.mubr.bf16.mxu0 0
  %1230 = vmatmul.mubr.bf16.gmra.mrb[0].mxu0 %v1124
  %v1231 = vpop.f32.mrb[0].mxu0
  %v1232 = vadd.f32 0.0, %v1231
  %v1233 = vpop.f32.mrb[0].mxu0
  %v1234 = vpop.f32.mrb[0].mxu0
  %v1235 = vadd.f32 0.0, %v1234
  %v1236 = vpop.f32.mrb[0].mxu0
  %1237 = vmatprep.mubr.bf16.mxu0 0
  %1238 = vmatmul.mubr.bf16.gmra.mrb[0].mxu0 %v1125
  %v1239 = vpop.f32.mrb[0].mxu0
  %v1240 = vadd.f32 0.0, %v1239
  %v1241 = vpop.f32.mrb[0].mxu0
  %v1242 = vpop.f32.mrb[0].mxu0
  %v1243 = vadd.f32 0.0, %v1242
  %v1244 = vpop.f32.mrb[0].mxu0
  %1245 = vmatprep.mubr.bf16.mxu0 0
  %1246 = vmatmul.mubr.bf16.gmra.mrb[0].mxu0 %v1126
  %v1247 = vpop.f32.mrb[0].mxu0
  %v1248 = vadd.f32 0.0, %v1247
  %v1249 = vpop.f32.mrb[0].mxu0
  %v1250 = vpop.f32.mrb[0].mxu0
  %v1251 = vadd.f32 0.0, %v1250
  %v1252 = vpop.f32.mrb[0].mxu0
  %1253 = vmatprep.mubr.bf16.mxu0 0
  %1254 = vmatmul.mubr.bf16.gmra.mrb[0].mxu0 %v1127
  %v1255 = vpop.f32.mrb[0].mxu0
  %v1256 = vadd.f32 0.0, %v1255
  %v1257 = vpop.f32.mrb[0].mxu0
  %v1258 = vpop.f32.mrb[0].mxu0
  %v1259 = vadd.f32 0.0, %v1258
  %v1260 = vpop.f32.mrb[0].mxu0
  %1261 = vmatprep.mubr.bf16.mxu0 0
  %1262 = vmatmul.mubr.bf16.gmra.mrb[0].mxu0 %v1128
  %v1263 = vpop.f32.mrb[0].mxu0
  %v1264 = vadd.f32 0.0, %v1263
  %v1265 = vpop.f32.mrb[0].mxu0
  %v1266 = vpop.f32.mrb[0].mxu0
  %v1267 = vadd.f32 0.0, %v1266
  %v1268 = vpop.f32.mrb[0].mxu0
  %1269 = vmatprep.mubr.bf16.mxu0 0
  %1270 = vmatmul.mubr.bf16.gmra.mrb[0].mxu0 %v1129
  %v1271 = vpop.f32.mrb[0].mxu0
  %v1272 = vadd.f32 0.0, %v1271
  %v1273 = vpop.f32.mrb[0].mxu0
  %v1274 = vpop.f32.mrb[0].mxu0
  %v1275 = vadd.f32 0.0, %v1274
  %v1276 = vpop.f32.mrb[0].mxu0
  %1277 = vmatprep.mubr.bf16.mxu0 0
  %1278 = vmatmul.mubr.bf16.gmra.mrb[0].mxu0 %v1130
  %v1279 = vpop.f32.mrb[0].mxu0
  %v1280 = vadd.f32 0.0, %v1279
  %v1281 = vpop.f32.mrb[0].mxu0
  %v1282 = vpop.f32.mrb[0].mxu0
  %v1283 = vadd.f32 0.0, %v1282
  %v1284 = vpop.f32.mrb[0].mxu0
  %1285 = vmatprep.mubr.bf16.mxu0 0
  %1286 = vmatmul.mubr.bf16.gmra.mrb[0].mxu0 %v1131
  %v1287 = vpop.f32.mrb[0].mxu0
  %v1288 = vadd.f32 0.0, %v1287
  %v1289 = vpop.f32.mrb[0].mxu0
  %v1290 = vpop.f32.mrb[0].mxu0
  %v1291 = vadd.f32 0.0, %v1290
  %v1292 = vpop.f32.mrb[0].mxu0
  %1293 = vdwg.mxu0
  %v1294 = vpack.c.bf16 %v1235, %v1232
  %v1295 = vpack.c.bf16 %v1243, %v1240
  %v1296 = vpack.c.bf16 %v1251, %v1248
  %v1297 = vpack.c.bf16 %v1259, %v1256
  %v1298 = vpack.c.bf16 %v1267, %v1264
  %v1299 = vpack.c.bf16 %v1275, %v1272
  %v1300 = vpack.c.bf16 %v1283, %v1280
  %v1301 = vpack.c.bf16 %v1291, %v1288
  %s1302 = scalar_lea.vmem %s5, 2
  %v1303 = vld [vmem:[%s1302] sm:$0x1]
  %v1305 = vlaneseq
  %v1306 = vshrl.u32 %v1305, 7
  %v1307 = vsub.s32 0, %v1306
  %v1308 = vrot.slane %v1303, %v1307
  %1310 = vmatprep.subr.bf16.mxu0 0
  %1311 = vmatpush1.bf16.msra.mxu0 %v1294
  %1312 = vmatprep.subr.bf16.mxu0 0
  %1313 = vmatpush1.bf16.msra.mxu0 %v1295
  %1314 = vmatprep.subr.bf16.mxu0 0
  %1315 = vmatpush1.bf16.msra.mxu0 %v1296
  %1316 = vmatprep.subr.bf16.mxu0 0
  %1317 = vmatpush1.bf16.msra.mxu0 %v1297
  %1318 = vmatprep.subr.bf16.mxu0 0
  %1319 = vmatpush1.bf16.msra.mxu0 %v1298
  %1320 = vmatprep.subr.bf16.mxu0 0
  %1321 = vmatpush1.bf16.msra.mxu0 %v1299
  %1322 = vmatprep.subr.bf16.mxu0 0
  %1323 = vmatpush1.bf16.msra.mxu0 %v1300
  %1324 = vmatprep.subr.bf16.mxu0 0
  %1325 = vmatpush1.bf16.msra.mxu0 %v1301
  %1326 = vmatprep.subr.bf16.mxu0 0
  %1327 = vmatpush1.bf16.msra.mxu0 0
  %1328 = vmatprep.subr.bf16.mxu0 0
  %1329 = vmatpush1.bf16.msra.mxu0 0
  %1330 = vmatprep.subr.bf16.mxu0 0
  %1331 = vmatpush1.bf16.msra.mxu0 0
  %1332 = vmatprep.subr.bf16.mxu0 0
  %1333 = vmatpush1.bf16.msra.mxu0 0
  %1334 = vmatprep.subr.bf16.mxu0 0
  %1335 = vmatpush1.bf16.msra.mxu0 0
  %1336 = vmatprep.subr.bf16.mxu0 0
  %1337 = vmatpush1.bf16.msra.mxu0 0
  %1338 = vmatprep.subr.bf16.mxu0 0
  %1339 = vmatpush1.bf16.msra.mxu0 0
  %1340 = vmatprep.subr.bf16.mxu0 0
  %1341 = vmatpush1.bf16.msra.mxu0 0
  %1342 = vmatprep.mubr.bf16.mxu0 0
  %1343 = vmatmul.mubr.bf16.gmra.mrb[0].mxu0 %v91
  %v1344 = vpop.f32.mrb[0].mxu0
  %v1345 = vadd.f32 %v1308, %v1344
  %v1346 = vpop.f32.mrb[0].mxu0
  %v1347 = vpop.f32.mrb[0].mxu0
  %v1348 = vadd.f32 %v1308, %v1347
  %v1349 = vpop.f32.mrb[0].mxu0
  %1350 = vmatprep.mubr.bf16.mxu0 0
  %1351 = vmatmul.mubr.bf16.gmra.mrb[0].mxu0 %v92
  %v1352 = vpop.f32.mrb[0].mxu0
  %v1353 = vadd.f32 %v1308, %v1352
  %v1354 = vpop.f32.mrb[0].mxu0
  %v1355 = vpop.f32.mrb[0].mxu0
  %v1356 = vadd.f32 %v1308, %v1355
  %v1357 = vpop.f32.mrb[0].mxu0
  %1358 = vmatprep.mubr.bf16.mxu0 0
  %1359 = vmatmul.mubr.bf16.gmra.mrb[0].mxu0 %v93
  %v1360 = vpop.f32.mrb[0].mxu0
  %v1361 = vadd.f32 %v1308, %v1360
  %v1362 = vpop.f32.mrb[0].mxu0
  %v1363 = vpop.f32.mrb[0].mxu0
  %v1364 = vadd.f32 %v1308, %v1363
  %v1365 = vpop.f32.mrb[0].mxu0
  %1366 = vmatprep.mubr.bf16.mxu0 0
  %1367 = vmatmul.mubr.bf16.gmra.mrb[0].mxu0 %v94
  %v1368 = vpop.f32.mrb[0].mxu0
  %v1369 = vadd.f32 %v1308, %v1368
  %v1370 = vpop.f32.mrb[0].mxu0
  %v1371 = vpop.f32.mrb[0].mxu0
  %v1372 = vadd.f32 %v1308, %v1371
  %v1373 = vpop.f32.mrb[0].mxu0
  %1374 = vmatprep.mubr.bf16.mxu0 0
  %1375 = vmatmul.mubr.bf16.gmra.mrb[0].mxu0 %v95
  %v1376 = vpop.f32.mrb[0].mxu0
  %v1377 = vadd.f32 %v1308, %v1376
  %v1378 = vpop.f32.mrb[0].mxu0
  %v1379 = vpop.f32.mrb[0].mxu0
  %v1380 = vadd.f32 %v1308, %v1379
  %v1381 = vpop.f32.mrb[0].mxu0
  %1382 = vmatprep.mubr.bf16.mxu0 0
  %1383 = vmatmul.mubr.bf16.gmra.mrb[0].mxu0 %v96
  %v1384 = vpop.f32.mrb[0].mxu0
  %v1385 = vadd.f32 %v1308, %v1384
  %v1386 = vpop.f32.mrb[0].mxu0
  %v1387 = vpop.f32.mrb[0].mxu0
  %v1388 = vadd.f32 %v1308, %v1387
  %v1389 = vpop.f32.mrb[0].mxu0
  %1390 = vmatprep.mubr.bf16.mxu0 0
  %1391 = vmatmul.mubr.bf16.gmra.mrb[0].mxu0 %v97
  %v1392 = vpop.f32.mrb[0].mxu0
  %v1393 = vadd.f32 %v1308, %v1392
  %v1394 = vpop.f32.mrb[0].mxu0
  %v1395 = vpop.f32.mrb[0].mxu0
  %v1396 = vadd.f32 %v1308, %v1395
  %v1397 = vpop.f32.mrb[0].mxu0
  %1398 = vmatprep.mubr.bf16.mxu0 0
  %1399 = vmatmul.mubr.bf16.gmra.mrb[0].mxu0 %v98
  %v1400 = vpop.f32.mrb[0].mxu0
  %v1401 = vadd.f32 %v1308, %v1400
  %v1402 = vpop.f32.mrb[0].mxu0
  %v1403 = vpop.f32.mrb[0].mxu0
  %v1404 = vadd.f32 %v1308, %v1403
  %v1405 = vpop.f32.mrb[0].mxu0
  %1406 = vdwg.mxu0
  %v1407 = vpack.c.bf16 %v1348, %v1345
  %v1408 = vpack.c.bf16 %v1356, %v1353
  %v1409 = vpack.c.bf16 %v1364, %v1361
  %v1410 = vpack.c.bf16 %v1372, %v1369
  %v1411 = vpack.c.bf16 %v1380, %v1377
  %v1412 = vpack.c.bf16 %v1388, %v1385
  %v1413 = vpack.c.bf16 %v1396, %v1393
  %v1414 = vpack.c.bf16 %v1404, %v1401
  %s1415 = scalar_lea.vmem %s4, 192
  %v1416 = vld [vmem:[%s1415] sm:$0xf]
  %v1417 = vld [vmem:[%s1415 + $0x4] sm:$0xf]
  %v1418 = vld [vmem:[%s1415 + $0x8] sm:$0xf]
  %v1419 = vld [vmem:[%s1415 + $0xc] sm:$0xf]
  %v1420 = vld [vmem:[%s1415 + $0x10] sm:$0xf]
  %v1421 = vld [vmem:[%s1415 + $0x14] sm:$0xf]
  %v1422 = vld [vmem:[%s1415 + $0x18] sm:$0xf]
  %v1423 = vld [vmem:[%s1415 + $0x1c] sm:$0xf]
  %v1424 = vld [vmem:[%s1415 + $0x20] sm:$0xf]
  %v1425 = vld [vmem:[%s1415 + $0x24] sm:$0xf]
  %v1426 = vld [vmem:[%s1415 + $0x28] sm:$0xf]
  %v1427 = vld [vmem:[%s1415 + $0x2c] sm:$0xf]
  %v1428 = vld [vmem:[%s1415 + $0x30] sm:$0xf]
  %v1429 = vld [vmem:[%s1415 + $0x34] sm:$0xf]
  %v1430 = vld [vmem:[%s1415 + $0x38] sm:$0xf]
  %v1431 = vld [vmem:[%s1415 + $0x3c] sm:$0xf]
  %v1448 = vunpack.c.l.b16 %v1416
  %v1449 = vunpack.c.l.b16 %v1417
  %v1450 = vunpack.c.l.b16 %v1418
  %v1451 = vunpack.c.l.b16 %v1419
  %v1452 = vunpack.c.l.b16 %v1420
  %v1453 = vunpack.c.l.b16 %v1421
  %v1454 = vunpack.c.l.b16 %v1422
  %v1455 = vunpack.c.l.b16 %v1423
  %v1456 = vunpack.c.l.b16 %v1424
  %v1457 = vunpack.c.l.b16 %v1425
  %v1458 = vunpack.c.l.b16 %v1426
  %v1459 = vunpack.c.l.b16 %v1427
  %v1460 = vunpack.c.l.b16 %v1428
  %v1461 = vunpack.c.l.b16 %v1429
  %v1462 = vunpack.c.l.b16 %v1430
  %v1463 = vunpack.c.l.b16 %v1431
  %v1464 = vpack.c.b16 %v1449, %v1448
  %v1465 = vpack.c.b16 %v1451, %v1450
  %v1466 = vpack.c.b16 %v1453, %v1452
  %v1467 = vpack.c.b16 %v1455, %v1454
  %v1468 = vpack.c.b16 %v1457, %v1456
  %v1469 = vpack.c.b16 %v1459, %v1458
  %v1470 = vpack.c.b16 %v1461, %v1460
  %v1471 = vpack.c.b16 %v1463, %v1462
  %1480 = vmatprep.subr.bf16.mxu0 0
  %1481 = vmatpush1.bf16.msra.mxu0 %v1464
  %1482 = vmatprep.subr.bf16.mxu0 0
  %1483 = vmatpush1.bf16.msra.mxu0 %v1465
  %1484 = vmatprep.subr.bf16.mxu0 0
  %1485 = vmatpush1.bf16.msra.mxu0 %v1466
  %1486 = vmatprep.subr.bf16.mxu0 0
  %1487 = vmatpush1.bf16.msra.mxu0 %v1467
  %1488 = vmatprep.subr.bf16.mxu0 0
  %1489 = vmatpush1.bf16.msra.mxu0 %v1468
  %1490 = vmatprep.subr.bf16.mxu0 0
  %1491 = vmatpush1.bf16.msra.mxu0 %v1469
  %1492 = vmatprep.subr.bf16.mxu0 0
  %1493 = vmatpush1.bf16.msra.mxu0 %v1470
  %1494 = vmatprep.subr.bf16.mxu0 0
  %1495 = vmatpush1.bf16.msra.mxu0 %v1471
  %1496 = vmatprep.subr.bf16.mxu0 0
  %1497 = vmatpush1.bf16.msra.mxu0 0
  %1498 = vmatprep.subr.bf16.mxu0 0
  %1499 = vmatpush1.bf16.msra.mxu0 0
  %1500 = vmatprep.subr.bf16.mxu0 0
  %1501 = vmatpush1.bf16.msra.mxu0 0
  %1502 = vmatprep.subr.bf16.mxu0 0
  %1503 = vmatpush1.bf16.msra.mxu0 0
  %1504 = vmatprep.subr.bf16.mxu0 0
  %1505 = vmatpush1.bf16.msra.mxu0 0
  %1506 = vmatprep.subr.bf16.mxu0 0
  %1507 = vmatpush1.bf16.msra.mxu0 0
  %1508 = vmatprep.subr.bf16.mxu0 0
  %1509 = vmatpush1.bf16.msra.mxu0 0
  %1510 = vmatprep.subr.bf16.mxu0 0
  %1511 = vmatpush1.bf16.msra.mxu0 0
  %1512 = vmatprep.mubr.bf16.mxu0 0
  %1513 = vmatmul.mubr.bf16.gmra.mrb[0].mxu0 %v1407
  %v1514 = vpop.f32.mrb[0].mxu0
  %v1515 = vadd.f32 0.0, %v1514
  %v1516 = vpop.f32.mrb[0].mxu0
  %v1517 = vpop.f32.mrb[0].mxu0
  %v1518 = vadd.f32 0.0, %v1517
  %v1519 = vpop.f32.mrb[0].mxu0
  %1520 = vmatprep.mubr.bf16.mxu0 0
  %1521 = vmatmul.mubr.bf16.gmra.mrb[0].mxu0 %v1408
  %v1522 = vpop.f32.mrb[0].mxu0
  %v1523 = vadd.f32 0.0, %v1522
  %v1524 = vpop.f32.mrb[0].mxu0
  %v1525 = vpop.f32.mrb[0].mxu0
  %v1526 = vadd.f32 0.0, %v1525
  %v1527 = vpop.f32.mrb[0].mxu0
  %1528 = vmatprep.mubr.bf16.mxu0 0
  %1529 = vmatmul.mubr.bf16.gmra.mrb[0].mxu0 %v1409
  %v1530 = vpop.f32.mrb[0].mxu0
  %v1531 = vadd.f32 0.0, %v1530
  %v1532 = vpop.f32.mrb[0].mxu0
  %v1533 = vpop.f32.mrb[0].mxu0
  %v1534 = vadd.f32 0.0, %v1533
  %v1535 = vpop.f32.mrb[0].mxu0
  %1536 = vmatprep.mubr.bf16.mxu0 0
  %1537 = vmatmul.mubr.bf16.gmra.mrb[0].mxu0 %v1410
  %v1538 = vpop.f32.mrb[0].mxu0
  %v1539 = vadd.f32 0.0, %v1538
  %v1540 = vpop.f32.mrb[0].mxu0
  %v1541 = vpop.f32.mrb[0].mxu0
  %v1542 = vadd.f32 0.0, %v1541
  %v1543 = vpop.f32.mrb[0].mxu0
  %1544 = vmatprep.mubr.bf16.mxu0 0
  %1545 = vmatmul.mubr.bf16.gmra.mrb[0].mxu0 %v1411
  %v1546 = vpop.f32.mrb[0].mxu0
  %v1547 = vadd.f32 0.0, %v1546
  %v1548 = vpop.f32.mrb[0].mxu0
  %v1549 = vpop.f32.mrb[0].mxu0
  %v1550 = vadd.f32 0.0, %v1549
  %v1551 = vpop.f32.mrb[0].mxu0
  %1552 = vmatprep.mubr.bf16.mxu0 0
  %1553 = vmatmul.mubr.bf16.gmra.mrb[0].mxu0 %v1412
  %v1554 = vpop.f32.mrb[0].mxu0
  %v1555 = vadd.f32 0.0, %v1554
  %v1556 = vpop.f32.mrb[0].mxu0
  %v1557 = vpop.f32.mrb[0].mxu0
  %v1558 = vadd.f32 0.0, %v1557
  %v1559 = vpop.f32.mrb[0].mxu0
  %1560 = vmatprep.mubr.bf16.mxu0 0
  %1561 = vmatmul.mubr.bf16.gmra.mrb[0].mxu0 %v1413
  %v1562 = vpop.f32.mrb[0].mxu0
  %v1563 = vadd.f32 0.0, %v1562
  %v1564 = vpop.f32.mrb[0].mxu0
  %v1565 = vpop.f32.mrb[0].mxu0
  %v1566 = vadd.f32 0.0, %v1565
  %v1567 = vpop.f32.mrb[0].mxu0
  %1568 = vmatprep.mubr.bf16.mxu0 0
  %1569 = vmatmul.mubr.bf16.gmra.mrb[0].mxu0 %v1414
  %v1570 = vpop.f32.mrb[0].mxu0
  %v1571 = vadd.f32 0.0, %v1570
  %v1572 = vpop.f32.mrb[0].mxu0
  %v1573 = vpop.f32.mrb[0].mxu0
  %v1574 = vadd.f32 0.0, %v1573
  %v1575 = vpop.f32.mrb[0].mxu0
  %1576 = vdwg.mxu0
  %v1577 = vpack.c.bf16 %v1518, %v1515
  %v1578 = vpack.c.bf16 %v1526, %v1523
  %v1579 = vpack.c.bf16 %v1534, %v1531
  %v1580 = vpack.c.bf16 %v1542, %v1539
  %v1581 = vpack.c.bf16 %v1550, %v1547
  %v1582 = vpack.c.bf16 %v1558, %v1555
  %v1583 = vpack.c.bf16 %v1566, %v1563
  %v1584 = vpack.c.bf16 %v1574, %v1571
  %s1585 = scalar_lea.vmem %s5, 3
  %v1586 = vld [vmem:[%s1585] sm:$0x1]
  %v1588 = vlaneseq
  %v1589 = vshrl.u32 %v1588, 7
  %v1590 = vsub.s32 0, %v1589
  %v1591 = vrot.slane %v1586, %v1590
  %1593 = vmatprep.subr.bf16.mxu0 0
  %1594 = vmatpush1.bf16.msra.mxu0 %v1577
  %1595 = vmatprep.subr.bf16.mxu0 0
  %1596 = vmatpush1.bf16.msra.mxu0 %v1578
  %1597 = vmatprep.subr.bf16.mxu0 0
  %1598 = vmatpush1.bf16.msra.mxu0 %v1579
  %1599 = vmatprep.subr.bf16.mxu0 0
  %1600 = vmatpush1.bf16.msra.mxu0 %v1580
  %1601 = vmatprep.subr.bf16.mxu0 0
  %1602 = vmatpush1.bf16.msra.mxu0 %v1581
  %1603 = vmatprep.subr.bf16.mxu0 0
  %1604 = vmatpush1.bf16.msra.mxu0 %v1582
  %1605 = vmatprep.subr.bf16.mxu0 0
  %1606 = vmatpush1.bf16.msra.mxu0 %v1583
  %1607 = vmatprep.subr.bf16.mxu0 0
  %1608 = vmatpush1.bf16.msra.mxu0 %v1584
  %1609 = vmatprep.subr.bf16.mxu0 0
  %1610 = vmatpush1.bf16.msra.mxu0 0
  %1611 = vmatprep.subr.bf16.mxu0 0
  %1612 = vmatpush1.bf16.msra.mxu0 0
  %1613 = vmatprep.subr.bf16.mxu0 0
  %1614 = vmatpush1.bf16.msra.mxu0 0
  %1615 = vmatprep.subr.bf16.mxu0 0
  %1616 = vmatpush1.bf16.msra.mxu0 0
  %1617 = vmatprep.subr.bf16.mxu0 0
  %1618 = vmatpush1.bf16.msra.mxu0 0
  %1619 = vmatprep.subr.bf16.mxu0 0
  %1620 = vmatpush1.bf16.msra.mxu0 0
  %1621 = vmatprep.subr.bf16.mxu0 0
  %1622 = vmatpush1.bf16.msra.mxu0 0
  %1623 = vmatprep.subr.bf16.mxu0 0
  %1624 = vmatpush1.bf16.msra.mxu0 0
  %1625 = vmatprep.mubr.bf16.mxu0 0
  %1626 = vmatmul.mubr.bf16.gmra.mrb[0].mxu0 %v91
  %v1627 = vpop.f32.mrb[0].mxu0
  %v1628 = vadd.f32 %v1591, %v1627
  %v1629 = vpop.f32.mrb[0].mxu0
  %v1630 = vpop.f32.mrb[0].mxu0
  %v1631 = vadd.f32 %v1591, %v1630
  %v1632 = vpop.f32.mrb[0].mxu0
  %1633 = vmatprep.mubr.bf16.mxu0 0
  %1634 = vmatmul.mubr.bf16.gmra.mrb[0].mxu0 %v92
  %v1635 = vpop.f32.mrb[0].mxu0
  %v1636 = vadd.f32 %v1591, %v1635
  %v1637 = vpop.f32.mrb[0].mxu0
  %v1638 = vpop.f32.mrb[0].mxu0
  %v1639 = vadd.f32 %v1591, %v1638
  %v1640 = vpop.f32.mrb[0].mxu0
  %1641 = vmatprep.mubr.bf16.mxu0 0
  %1642 = vmatmul.mubr.bf16.gmra.mrb[0].mxu0 %v93
  %v1643 = vpop.f32.mrb[0].mxu0
  %v1644 = vadd.f32 %v1591, %v1643
  %v1645 = vpop.f32.mrb[0].mxu0
  %v1646 = vpop.f32.mrb[0].mxu0
  %v1647 = vadd.f32 %v1591, %v1646
  %v1648 = vpop.f32.mrb[0].mxu0
  %1649 = vmatprep.mubr.bf16.mxu0 0
  %1650 = vmatmul.mubr.bf16.gmra.mrb[0].mxu0 %v94
  %v1651 = vpop.f32.mrb[0].mxu0
  %v1652 = vadd.f32 %v1591, %v1651
  %v1653 = vpop.f32.mrb[0].mxu0
  %v1654 = vpop.f32.mrb[0].mxu0
  %v1655 = vadd.f32 %v1591, %v1654
  %v1656 = vpop.f32.mrb[0].mxu0
  %1657 = vmatprep.mubr.bf16.mxu0 0
  %1658 = vmatmul.mubr.bf16.gmra.mrb[0].mxu0 %v95
  %v1659 = vpop.f32.mrb[0].mxu0
  %v1660 = vadd.f32 %v1591, %v1659
  %v1661 = vpop.f32.mrb[0].mxu0
  %v1662 = vpop.f32.mrb[0].mxu0
  %v1663 = vadd.f32 %v1591, %v1662
  %v1664 = vpop.f32.mrb[0].mxu0
  %1665 = vmatprep.mubr.bf16.mxu0 0
  %1666 = vmatmul.mubr.bf16.gmra.mrb[0].mxu0 %v96
  %v1667 = vpop.f32.mrb[0].mxu0
  %v1668 = vadd.f32 %v1591, %v1667
  %v1669 = vpop.f32.mrb[0].mxu0
  %v1670 = vpop.f32.mrb[0].mxu0
  %v1671 = vadd.f32 %v1591, %v1670
  %v1672 = vpop.f32.mrb[0].mxu0
  %1673 = vmatprep.mubr.bf16.mxu0 0
  %1674 = vmatmul.mubr.bf16.gmra.mrb[0].mxu0 %v97
  %v1675 = vpop.f32.mrb[0].mxu0
  %v1676 = vadd.f32 %v1591, %v1675
  %v1677 = vpop.f32.mrb[0].mxu0
  %v1678 = vpop.f32.mrb[0].mxu0
  %v1679 = vadd.f32 %v1591, %v1678
  %v1680 = vpop.f32.mrb[0].mxu0
  %1681 = vmatprep.mubr.bf16.mxu0 0
  %1682 = vmatmul.mubr.bf16.gmra.mrb[0].mxu0 %v98
  %v1683 = vpop.f32.mrb[0].mxu0
  %v1684 = vadd.f32 %v1591, %v1683
  %v1685 = vpop.f32.mrb[0].mxu0
  %v1686 = vpop.f32.mrb[0].mxu0
  %v1687 = vadd.f32 %v1591, %v1686
  %v1688 = vpop.f32.mrb[0].mxu0
  %1689 = vdwg.mxu0
  %v1690 = vmax.f32 %v1628, 0.0
  %v1691 = vmax.f32 %v1631, 0.0
  %v1692 = vmax.f32 %v1636, 0.0
  %v1693 = vmax.f32 %v1639, 0.0
  %v1694 = vmax.f32 %v1644, 0.0
  %v1695 = vmax.f32 %v1647, 0.0
  %v1696 = vmax.f32 %v1652, 0.0
  %v1697 = vmax.f32 %v1655, 0.0
  %v1698 = vmax.f32 %v1660, 0.0
  %v1699 = vmax.f32 %v1663, 0.0
  %v1700 = vmax.f32 %v1668, 0.0
  %v1701 = vmax.f32 %v1671, 0.0
  %v1702 = vmax.f32 %v1676, 0.0
  %v1703 = vmax.f32 %v1679, 0.0
  %v1704 = vmax.f32 %v1684, 0.0
  %v1705 = vmax.f32 %v1687, 0.0
  %v1706 = vpack.c.bf16 %v1691, %v1690
  %v1707 = vpack.c.bf16 %v1693, %v1692
  %v1708 = vpack.c.bf16 %v1695, %v1694
  %v1709 = vpack.c.bf16 %v1697, %v1696
  %v1710 = vpack.c.bf16 %v1699, %v1698
  %v1711 = vpack.c.bf16 %v1701, %v1700
  %v1712 = vpack.c.bf16 %v1703, %v1702
  %v1713 = vpack.c.bf16 %v1705, %v1704
  %s1714 = scalar_lea.vmem %s4, 256
  %v1715 = vld [vmem:[%s1714] sm:$0xf]
  %v1716 = vld [vmem:[%s1714 + $0x4] sm:$0xf]
  %v1717 = vld [vmem:[%s1714 + $0x8] sm:$0xf]
  %v1718 = vld [vmem:[%s1714 + $0xc] sm:$0xf]
  %v1719 = vld [vmem:[%s1714 + $0x10] sm:$0xf]
  %v1720 = vld [vmem:[%s1714 + $0x14] sm:$0xf]
  %v1721 = vld [vmem:[%s1714 + $0x18] sm:$0xf]
  %v1722 = vld [vmem:[%s1714 + $0x1c] sm:$0xf]
  %v1723 = vld [vmem:[%s1714 + $0x20] sm:$0xf]
  %v1724 = vld [vmem:[%s1714 + $0x24] sm:$0xf]
  %v1725 = vld [vmem:[%s1714 + $0x28] sm:$0xf]
  %v1726 = vld [vmem:[%s1714 + $0x2c] sm:$0xf]
  %v1727 = vld [vmem:[%s1714 + $0x30] sm:$0xf]
  %v1728 = vld [vmem:[%s1714 + $0x34] sm:$0xf]
  %v1729 = vld [vmem:[%s1714 + $0x38] sm:$0xf]
  %v1730 = vld [vmem:[%s1714 + $0x3c] sm:$0xf]
  %v1747 = vunpack.c.l.b16 %v1715
  %v1748 = vunpack.c.l.b16 %v1716
  %v1749 = vunpack.c.l.b16 %v1717
  %v1750 = vunpack.c.l.b16 %v1718
  %v1751 = vunpack.c.l.b16 %v1719
  %v1752 = vunpack.c.l.b16 %v1720
  %v1753 = vunpack.c.l.b16 %v1721
  %v1754 = vunpack.c.l.b16 %v1722
  %v1755 = vunpack.c.l.b16 %v1723
  %v1756 = vunpack.c.l.b16 %v1724
  %v1757 = vunpack.c.l.b16 %v1725
  %v1758 = vunpack.c.l.b16 %v1726
  %v1759 = vunpack.c.l.b16 %v1727
  %v1760 = vunpack.c.l.b16 %v1728
  %v1761 = vunpack.c.l.b16 %v1729
  %v1762 = vunpack.c.l.b16 %v1730
  %v1763 = vpack.c.b16 %v1748, %v1747
  %v1764 = vpack.c.b16 %v1750, %v1749
  %v1765 = vpack.c.b16 %v1752, %v1751
  %v1766 = vpack.c.b16 %v1754, %v1753
  %v1767 = vpack.c.b16 %v1756, %v1755
  %v1768 = vpack.c.b16 %v1758, %v1757
  %v1769 = vpack.c.b16 %v1760, %v1759
  %v1770 = vpack.c.b16 %v1762, %v1761
  %1779 = vmatprep.subr.bf16.mxu0 0
  %1780 = vmatpush1.bf16.msra.mxu0 %v1763
  %1781 = vmatprep.subr.bf16.mxu0 0
  %1782 = vmatpush1.bf16.msra.mxu0 %v1764
  %1783 = vmatprep.subr.bf16.mxu0 0
  %1784 = vmatpush1.bf16.msra.mxu0 %v1765
  %1785 = vmatprep.subr.bf16.mxu0 0
  %1786 = vmatpush1.bf16.msra.mxu0 %v1766
  %1787 = vmatprep.subr.bf16.mxu0 0
  %1788 = vmatpush1.bf16.msra.mxu0 %v1767
  %1789 = vmatprep.subr.bf16.mxu0 0
  %1790 = vmatpush1.bf16.msra.mxu0 %v1768
  %1791 = vmatprep.subr.bf16.mxu0 0
  %1792 = vmatpush1.bf16.msra.mxu0 %v1769
  %1793 = vmatprep.subr.bf16.mxu0 0
  %1794 = vmatpush1.bf16.msra.mxu0 %v1770
  %1795 = vmatprep.subr.bf16.mxu0 0
  %1796 = vmatpush1.bf16.msra.mxu0 0
  %1797 = vmatprep.subr.bf16.mxu0 0
  %1798 = vmatpush1.bf16.msra.mxu0 0
  %1799 = vmatprep.subr.bf16.mxu0 0
  %1800 = vmatpush1.bf16.msra.mxu0 0
  %1801 = vmatprep.subr.bf16.mxu0 0
  %1802 = vmatpush1.bf16.msra.mxu0 0
  %1803 = vmatprep.subr.bf16.mxu0 0
  %1804 = vmatpush1.bf16.msra.mxu0 0
  %1805 = vmatprep.subr.bf16.mxu0 0
  %1806 = vmatpush1.bf16.msra.mxu0 0
  %1807 = vmatprep.subr.bf16.mxu0 0
  %1808 = vmatpush1.bf16.msra.mxu0 0
  %1809 = vmatprep.subr.bf16.mxu0 0
  %1810 = vmatpush1.bf16.msra.mxu0 0
  %1811 = vmatprep.mubr.bf16.mxu0 0
  %1812 = vmatmul.mubr.bf16.gmra.mrb[0].mxu0 %v1706
  %v1813 = vpop.f32.mrb[0].mxu0
  %v1814 = vadd.f32 0.0, %v1813
  %v1815 = vpop.f32.mrb[0].mxu0
  %v1816 = vpop.f32.mrb[0].mxu0
  %v1817 = vadd.f32 0.0, %v1816
  %v1818 = vpop.f32.mrb[0].mxu0
  %1819 = vmatprep.mubr.bf16.mxu0 0
  %1820 = vmatmul.mubr.bf16.gmra.mrb[0].mxu0 %v1707
  %v1821 = vpop.f32.mrb[0].mxu0
  %v1822 = vadd.f32 0.0, %v1821
  %v1823 = vpop.f32.mrb[0].mxu0
  %v1824 = vpop.f32.mrb[0].mxu0
  %v1825 = vadd.f32 0.0, %v1824
  %v1826 = vpop.f32.mrb[0].mxu0
  %1827 = vmatprep.mubr.bf16.mxu0 0
  %1828 = vmatmul.mubr.bf16.gmra.mrb[0].mxu0 %v1708
  %v1829 = vpop.f32.mrb[0].mxu0
  %v1830 = vadd.f32 0.0, %v1829
  %v1831 = vpop.f32.mrb[0].mxu0
  %v1832 = vpop.f32.mrb[0].mxu0
  %v1833 = vadd.f32 0.0, %v1832
  %v1834 = vpop.f32.mrb[0].mxu0
  %1835 = vmatprep.mubr.bf16.mxu0 0
  %1836 = vmatmul.mubr.bf16.gmra.mrb[0].mxu0 %v1709
  %v1837 = vpop.f32.mrb[0].mxu0
  %v1838 = vadd.f32 0.0, %v1837
  %v1839 = vpop.f32.mrb[0].mxu0
  %v1840 = vpop.f32.mrb[0].mxu0
  %v1841 = vadd.f32 0.0, %v1840
  %v1842 = vpop.f32.mrb[0].mxu0
  %1843 = vmatprep.mubr.bf16.mxu0 0
  %1844 = vmatmul.mubr.bf16.gmra.mrb[0].mxu0 %v1710
  %v1845 = vpop.f32.mrb[0].mxu0
  %v1846 = vadd.f32 0.0, %v1845
  %v1847 = vpop.f32.mrb[0].mxu0
  %v1848 = vpop.f32.mrb[0].mxu0
  %v1849 = vadd.f32 0.0, %v1848
  %v1850 = vpop.f32.mrb[0].mxu0
  %1851 = vmatprep.mubr.bf16.mxu0 0
  %1852 = vmatmul.mubr.bf16.gmra.mrb[0].mxu0 %v1711
  %v1853 = vpop.f32.mrb[0].mxu0
  %v1854 = vadd.f32 0.0, %v1853
  %v1855 = vpop.f32.mrb[0].mxu0
  %v1856 = vpop.f32.mrb[0].mxu0
  %v1857 = vadd.f32 0.0, %v1856
  %v1858 = vpop.f32.mrb[0].mxu0
  %1859 = vmatprep.mubr.bf16.mxu0 0
  %1860 = vmatmul.mubr.bf16.gmra.mrb[0].mxu0 %v1712
  %v1861 = vpop.f32.mrb[0].mxu0
  %v1862 = vadd.f32 0.0, %v1861
  %v1863 = vpop.f32.mrb[0].mxu0
  %v1864 = vpop.f32.mrb[0].mxu0
  %v1865 = vadd.f32 0.0, %v1864
  %v1866 = vpop.f32.mrb[0].mxu0
  %1867 = vmatprep.mubr.bf16.mxu0 0
  %1868 = vmatmul.mubr.bf16.gmra.mrb[0].mxu0 %v1713
  %v1869 = vpop.f32.mrb[0].mxu0
  %v1870 = vadd.f32 0.0, %v1869
  %v1871 = vpop.f32.mrb[0].mxu0
  %v1872 = vpop.f32.mrb[0].mxu0
  %v1873 = vadd.f32 0.0, %v1872
  %v1874 = vpop.f32.mrb[0].mxu0
  %1875 = vdwg.mxu0
  %v1876 = vpack.c.bf16 %v1817, %v1814
  %v1877 = vpack.c.bf16 %v1825, %v1822
  %v1878 = vpack.c.bf16 %v1833, %v1830
  %v1879 = vpack.c.bf16 %v1841, %v1838
  %v1880 = vpack.c.bf16 %v1849, %v1846
  %v1881 = vpack.c.bf16 %v1857, %v1854
  %v1882 = vpack.c.bf16 %v1865, %v1862
  %v1883 = vpack.c.bf16 %v1873, %v1870
  %s1884 = scalar_lea.vmem %s5, 4
  %v1885 = vld [vmem:[%s1884] sm:$0x1]
  %v1887 = vlaneseq
  %v1888 = vshrl.u32 %v1887, 7
  %v1889 = vsub.s32 0, %v1888
  %v1890 = vrot.slane %v1885, %v1889
  %1892 = vmatprep.subr.bf16.mxu0 0
  %1893 = vmatpush1.bf16.msra.mxu0 %v1876
  %1894 = vmatprep.subr.bf16.mxu0 0
  %1895 = vmatpush1.bf16.msra.mxu0 %v1877
  %1896 = vmatprep.subr.bf16.mxu0 0
  %1897 = vmatpush1.bf16.msra.mxu0 %v1878
  %1898 = vmatprep.subr.bf16.mxu0 0
  %1899 = vmatpush1.bf16.msra.mxu0 %v1879
  %1900 = vmatprep.subr.bf16.mxu0 0
  %1901 = vmatpush1.bf16.msra.mxu0 %v1880
  %1902 = vmatprep.subr.bf16.mxu0 0
  %1903 = vmatpush1.bf16.msra.mxu0 %v1881
  %1904 = vmatprep.subr.bf16.mxu0 0
  %1905 = vmatpush1.bf16.msra.mxu0 %v1882
  %1906 = vmatprep.subr.bf16.mxu0 0
  %1907 = vmatpush1.bf16.msra.mxu0 %v1883
  %1908 = vmatprep.subr.bf16.mxu0 0
  %1909 = vmatpush1.bf16.msra.mxu0 0
  %1910 = vmatprep.subr.bf16.mxu0 0
  %1911 = vmatpush1.bf16.msra.mxu0 0
  %1912 = vmatprep.subr.bf16.mxu0 0
  %1913 = vmatpush1.bf16.msra.mxu0 0
  %1914 = vmatprep.subr.bf16.mxu0 0
  %1915 = vmatpush1.bf16.msra.mxu0 0
  %1916 = vmatprep.subr.bf16.mxu0 0
  %1917 = vmatpush1.bf16.msra.mxu0 0
  %1918 = vmatprep.subr.bf16.mxu0 0
  %1919 = vmatpush1.bf16.msra.mxu0 0
  %1920 = vmatprep.subr.bf16.mxu0 0
  %1921 = vmatpush1.bf16.msra.mxu0 0
  %1922 = vmatprep.subr.bf16.mxu0 0
  %1923 = vmatpush1.bf16.msra.mxu0 0
  %1924 = vmatprep.mubr.bf16.mxu0 0
  %1925 = vmatmul.mubr.bf16.gmra.mrb[0].mxu0 %v91
  %v1926 = vpop.f32.mrb[0].mxu0
  %v1927 = vadd.f32 %v1890, %v1926
  %v1928 = vpop.f32.mrb[0].mxu0
  %v1929 = vpop.f32.mrb[0].mxu0
  %v1930 = vadd.f32 %v1890, %v1929
  %v1931 = vpop.f32.mrb[0].mxu0
  %1932 = vmatprep.mubr.bf16.mxu0 0
  %1933 = vmatmul.mubr.bf16.gmra.mrb[0].mxu0 %v92
  %v1934 = vpop.f32.mrb[0].mxu0
  %v1935 = vadd.f32 %v1890, %v1934
  %v1936 = vpop.f32.mrb[0].mxu0
  %v1937 = vpop.f32.mrb[0].mxu0
  %v1938 = vadd.f32 %v1890, %v1937
  %v1939 = vpop.f32.mrb[0].mxu0
  %1940 = vmatprep.mubr.bf16.mxu0 0
  %1941 = vmatmul.mubr.bf16.gmra.mrb[0].mxu0 %v93
  %v1942 = vpop.f32.mrb[0].mxu0
  %v1943 = vadd.f32 %v1890, %v1942
  %v1944 = vpop.f32.mrb[0].mxu0
  %v1945 = vpop.f32.mrb[0].mxu0
  %v1946 = vadd.f32 %v1890, %v1945
  %v1947 = vpop.f32.mrb[0].mxu0
  %1948 = vmatprep.mubr.bf16.mxu0 0
  %1949 = vmatmul.mubr.bf16.gmra.mrb[0].mxu0 %v94
  %v1950 = vpop.f32.mrb[0].mxu0
  %v1951 = vadd.f32 %v1890, %v1950
  %v1952 = vpop.f32.mrb[0].mxu0
  %v1953 = vpop.f32.mrb[0].mxu0
  %v1954 = vadd.f32 %v1890, %v1953
  %v1955 = vpop.f32.mrb[0].mxu0
  %1956 = vmatprep.mubr.bf16.mxu0 0
  %1957 = vmatmul.mubr.bf16.gmra.mrb[0].mxu0 %v95
  %v1958 = vpop.f32.mrb[0].mxu0
  %v1959 = vadd.f32 %v1890, %v1958
  %v1960 = vpop.f32.mrb[0].mxu0
  %v1961 = vpop.f32.mrb[0].mxu0
  %v1962 = vadd.f32 %v1890, %v1961
  %v1963 = vpop.f32.mrb[0].mxu0
  %1964 = vmatprep.mubr.bf16.mxu0 0
  %1965 = vmatmul.mubr.bf16.gmra.mrb[0].mxu0 %v96
  %v1966 = vpop.f32.mrb[0].mxu0
  %v1967 = vadd.f32 %v1890, %v1966
  %v1968 = vpop.f32.mrb[0].mxu0
  %v1969 = vpop.f32.mrb[0].mxu0
  %v1970 = vadd.f32 %v1890, %v1969
  %v1971 = vpop.f32.mrb[0].mxu0
  %1972 = vmatprep.mubr.bf16.mxu0 0
  %1973 = vmatmul.mubr.bf16.gmra.mrb[0].mxu0 %v97
  %v1974 = vpop.f32.mrb[0].mxu0
  %v1975 = vadd.f32 %v1890, %v1974
  %v1976 = vpop.f32.mrb[0].mxu0
  %v1977 = vpop.f32.mrb[0].mxu0
  %v1978 = vadd.f32 %v1890, %v1977
  %v1979 = vpop.f32.mrb[0].mxu0
  %1980 = vmatprep.mubr.bf16.mxu0 0
  %1981 = vmatmul.mubr.bf16.gmra.mrb[0].mxu0 %v98
  %v1982 = vpop.f32.mrb[0].mxu0
  %v1983 = vadd.f32 %v1890, %v1982
  %v1984 = vpop.f32.mrb[0].mxu0
  %v1985 = vpop.f32.mrb[0].mxu0
  %v1986 = vadd.f32 %v1890, %v1985
  %v1987 = vpop.f32.mrb[0].mxu0
  %1988 = vdwg.mxu0
  %v1989 = vmax.f32 %v1927, 0.0
  %v1990 = vmax.f32 %v1930, 0.0
  %v1991 = vmax.f32 %v1935, 0.0
  %v1992 = vmax.f32 %v1938, 0.0
  %v1993 = vmax.f32 %v1943, 0.0
  %v1994 = vmax.f32 %v1946, 0.0
  %v1995 = vmax.f32 %v1951, 0.0
  %v1996 = vmax.f32 %v1954, 0.0
  %v1997 = vmax.f32 %v1959, 0.0
  %v1998 = vmax.f32 %v1962, 0.0
  %v1999 = vmax.f32 %v1967, 0.0
  %v2000 = vmax.f32 %v1970, 0.0
  %v2001 = vmax.f32 %v1975, 0.0
  %v2002 = vmax.f32 %v1978, 0.0
  %v2003 = vmax.f32 %v1983, 0.0
  %v2004 = vmax.f32 %v1986, 0.0
  %2005 = vst [vmem:[%s8] sm:$0xff] %v1989
  %2006 = vst [vmem:[%s8 + $0x8] sm:$0xff] %v1990
  %2007 = vst [vmem:[%s8 + $0x10] sm:$0xff] %v1991
  %2008 = vst [vmem:[%s8 + $0x18] sm:$0xff] %v1992
  %2009 = vst [vmem:[%s8 + $0x20] sm:$0xff] %v1993
  %2010 = vst [vmem:[%s8 + $0x28] sm:$0xff] %v1994
  %2011 = vst [vmem:[%s8 + $0x30] sm:$0xff] %v1995
  %2012 = vst [vmem:[%s8 + $0x38] sm:$0xff] %v1996
  %2013 = vst [vmem:[%s8 + $0x40] sm:$0xff] %v1997
  %2014 = vst [vmem:[%s8 + $0x48] sm:$0xff] %v1998
  %2015 = vst [vmem:[%s8 + $0x50] sm:$0xff] %v1999
  %2016 = vst [vmem:[%s8 + $0x58] sm:$0xff] %v2000
  %2017 = vst [vmem:[%s8 + $0x60] sm:$0xff] %v2001
  %2018 = vst [vmem:[%s8 + $0x68] sm:$0xff] %v2002
  %2019 = vst [vmem:[%s8 + $0x70] sm:$0xff] %v2003
  %2020 = vst [vmem:[%s8 + $0x78] sm:$0xff] %v2004
  // Predicated region
  $region26: #{directed_process_vgae_forward.2} parent=0 // pred_check
    _
  $region27: #{directed_process_vgae_forward.2} parent=0 // pred_check_branch
    %2022 = sbr.rel (0) target = $region29
  $region28: #{directed_process_vgae_forward.2} parent=0 // pred_region
    _
  $region29: #{directed_process_vgae_forward.2} parent=0 // pred_fallthru
    _
  // Predicated region
  $region30: #{directed_process_vgae_forward.2} parent=0 // pred_check
    _
  $region31: #{directed_process_vgae_forward.2} parent=0 // pred_check_branch
    %2024 = sbr.rel (0) target = $region33
  $region32: #{directed_process_vgae_forward.2} parent=0 // pred_region
    _
  $region33: #{directed_process_vgae_forward.2} parent=0 // pred_fallthru
    _
  // Predicated region
  $region34: #{directed_process_vgae_forward.2} parent=0 // pred_check
    _
  $region35: #{directed_process_vgae_forward.2} parent=0 // pred_check_branch
    %2026 = sbr.rel (0) target = $region37
  $region36: #{directed_process_vgae_forward.2} parent=0 // pred_region
    _
  $region37: #{directed_process_vgae_forward.2} parent=0 // pred_fallthru
    _
  // Predicated region
  $region38: #{directed_process_vgae_forward.2} parent=0 // pred_check
    _
  $region39: #{directed_process_vgae_forward.2} parent=0 // pred_check_branch
    %2028 = sbr.rel (0) target = $region41
  $region40: #{directed_process_vgae_forward.2} parent=0 // pred_region
    _
  $region41: #{directed_process_vgae_forward.2} parent=0 // pred_fallthru
    _
  // Predicated region
  $region42: #{directed_process_vgae_forward.2} parent=0 // pred_check
    _
  $region43: #{directed_process_vgae_forward.2} parent=0 // pred_check_branch
    %2030 = sbr.rel (0) target = $region45
  $region44: #{directed_process_vgae_forward.2} parent=0 // pred_region
    _
  $region45: #{directed_process_vgae_forward.2} parent=0 // pred_fallthru
    _
  // Predicated region
  $region46: #{directed_process_vgae_forward.2} parent=0 // pred_check
    _
  $region47: #{directed_process_vgae_forward.2} parent=0 // pred_check_branch
    %2032 = sbr.rel (0) target = $region49
  $region48: #{directed_process_vgae_forward.2} parent=0 // pred_region
    _
  $region49: #{directed_process_vgae_forward.2} parent=0 // pred_fallthru
    _

</llo_original>
